<compile_context>
chip_gen: v7x
topology: tpu7x:2x2x1
jax: 0.10.0
libtpu: 0.0.40
codegen_flags: <defaults>
</compile_context>

<pallas_src>
import jax
import jax.numpy as jnp
from jax import lax
from jax.experimental import pallas as pl
from jax.experimental.pallas import tpu as pltpu

IN_CH = 3
L_IN = 16                           # example sequence length
L1 = (L_IN + 2 * 1 - 3) // 2 + 1    # after conv1 (stride 2)    -> 8
L2 = (L1 + 2 * 1 - 3) // 2 + 1      # after dw_conv2 (stride 2) -> 4
NUM_CLASSES = 2
NC_PAD = 8                          # sublane-padded class dim of output tile
BN_EPS = 1e-5
B_TILE_MAX = 512                    # batch samples per grid step


# --------------------------------- kernel -----------------------------------
def mobilenet1d_kernel(x_ref, w1_ref, b1_ref, w2_ref, b2_ref,
                       w3_ref, b3_ref, wfc_ref, bfc_ref, o_ref):
    f32, bf16 = jnp.float32, jnp.bfloat16

    # stage 1: conv1(k3,s2,p1) + bn1 + relu — block-diagonal im2col matmul.
    h = jnp.dot(x_ref[...], w1_ref[...], preferred_element_type=f32)
    h = jnp.maximum(h + b1_ref[...], 0.0)                     # (bt, L1*32)

    # stage 2: dw_conv1(k3,s1,p1) -> pw_conv1 + bn2 + relu — banded block matmul.
    p = jnp.dot(h.astype(bf16), w2_ref[...], preferred_element_type=f32)
    p = jnp.maximum(p + b2_ref[...], 0.0)                     # (bt, L1*64)

    # stage 3: dw_conv2(k3,s2,p1) -> pw_conv2 + bn3 + relu — banded block
    # matmul that only produces the L2 stride-2 output positions.
    q = jnp.dot(p.astype(bf16), w3_ref[...], preferred_element_type=f32)
    q = jnp.maximum(q + b3_ref[...], 0.0)                     # (bt, L2*128)

    # stage 4: global average pool (folded into wfc) + fc;
    # output is classes-on-sublanes / batch-on-lanes (lane-dense stores).
    o_ref[...] = lax.dot_general(
        wfc_ref[...], q.astype(bf16),
        dimension_numbers=(((1,), (1,)), ((), ())),
        preferred_element_type=f32) + bfc_ref[...]            # (NC_PAD, bt)


# --------------------------------- wrapper ----------------------------------
def _round_up(n, m):
    return ((n + m - 1) // m) * m


def _full_spec(a):
    nd = a.ndim
    return pl.BlockSpec(a.shape, lambda b, _nd=nd: (0,) * _nd)


def mobilenet1d_forward(x_ncw, kernel_params):
    """x_ncw: (B, 3, L_IN) float32 (PyTorch NCW). Returns (B, NUM_CLASSES)."""
    B = x_ncw.shape[0]
    x = jnp.transpose(x_ncw, (0, 2, 1)).astype(jnp.float32)   # (B, L_IN, 3)

    # conv1 im2col (k=3, s=2, p=1): lane = 9*l + 3*k + c  -> lane-dense (B, 72).
    xp = jnp.pad(x, ((0, 0), (1, 1), (0, 0)))                 # (B, L_IN+2, 3)
    patches = jnp.concatenate(
        [xp[:, k:k + 2 * L1:2, :] for k in range(3)], axis=-1)  # (B, L1, 9)

    # Batch tiling: one tile for small B; >=2 lane-aligned tiles for larger B
    # so the "parallel" grid axis can spread across TensorCores (v7x).
    if B <= 128:
        bt = max(8, _round_up(B, 8))
        b_pad = bt
    else:
        bt = min(B_TILE_MAX, _round_up(pl.cdiv(B, 2), 128))
        b_pad = _round_up(B, bt)

    patches = jnp.pad(patches, ((0, b_pad - B), (0, 0), (0, 0)))
    xin = patches.reshape(b_pad, L1 * 3 * IN_CH).astype(jnp.bfloat16)

    in_specs = [pl.BlockSpec((bt, L1 * 3 * IN_CH), lambda b: (b, 0))]
    in_specs += [_full_spec(w) for w in kernel_params]

    out = pl.pallas_call(
        mobilenet1d_kernel,
        out_shape=jax.ShapeDtypeStruct((NC_PAD, b_pad), jnp.float32),
        grid_spec=pltpu.PrefetchScalarGridSpec(
            num_scalar_prefetch=0,
            grid=(b_pad // bt,),
            in_specs=in_specs,
            out_specs=pl.BlockSpec((NC_PAD, bt), lambda b: (0, b)),
        ),
        compiler_params=pltpu.CompilerParams(
            dimension_semantics=("parallel",),
            vmem_limit_bytes=32 * 1024 * 1024),
    )(xin, *kernel_params)
    return out[:NUM_CLASSES, :B].T


# ---------------- parameters (deterministic, PyTorch-layout first) ----------
def make_torch_params(key):
    ks = jax.random.split(key, 18)
    n = lambda k, s, sc=0.1: sc * jax.random.normal(k, s, jnp.float32)
    return dict(
        conv1_w=n(ks[0], (32, 3, 3)),  conv1_b=n(ks[1], (32,)),
        bn1_g=1.0 + n(ks[2], (32,)),   bn1_b=n(ks[3], (32,)),
        dw1_w=n(ks[4], (32, 1, 3)),    dw1_b=n(ks[5], (32,)),
        pw1_w=n(ks[6], (64, 32, 1)),   pw1_b=n(ks[7], (64,)),
        bn2_g=1.0 + n(ks[8], (64,)),   bn2_b=n(ks[9], (64,)),
        dw2_w=n(ks[10], (64, 1, 3)),   dw2_b=n(ks[11], (64,)),
        pw2_w=n(ks[12], (128, 64, 1)), pw2_b=n(ks[13], (128,)),
        bn3_g=1.0 + n(ks[14], (128,)), bn3_b=n(ks[15], (128,)),
        fc_w=n(ks[16], (2, 128)),      fc_b=n(ks[17], (2,)),
    )


def _bn_fold(gamma, beta):
    # eval-mode BN of a freshly constructed module: running_mean=0, running_var=1
    scale = gamma / jnp.sqrt(1.0 + BN_EPS)
    return scale, beta


def to_kernel_params(tp):
    f32, bf16 = jnp.float32, jnp.bfloat16
    s1, t1 = _bn_fold(tp["bn1_g"], tp["bn1_b"])
    s2, t2 = _bn_fold(tp["bn2_g"], tp["bn2_b"])
    s3, t3 = _bn_fold(tp["bn3_g"], tp["bn3_b"])

    # stage 1: conv1 + bn1 as a block-diagonal (L1*9, L1*32) matrix.
    w1 = jnp.transpose(tp["conv1_w"], (2, 1, 0)).reshape(9, 32) * s1[None, :]
    b1 = tp["conv1_b"] * s1 + t1
    w1bd = jnp.zeros((L1 * 9, L1 * 32), f32)
    for l in range(L1):
        w1bd = w1bd.at[9 * l:9 * (l + 1), 32 * l:32 * (l + 1)].set(w1)
    b1rep = jnp.tile(b1, L1)

    # stage 2: dw_conv1 folded into pw_conv1 (+bn2) as a banded (L1*32, L1*64)
    # block matrix; dw/pw biases folded into b2.
    wdw1 = jnp.transpose(tp["dw1_w"][:, 0, :], (1, 0))                 # (3, 32)
    wpw1 = jnp.transpose(tp["pw1_w"][:, :, 0], (1, 0)) * s2[None, :]   # (32, 64)
    b2 = tp["dw1_b"] @ wpw1 + tp["pw1_b"] * s2 + t2
    w2bd = jnp.zeros((L1 * 32, L1 * 64), f32)
    for l in range(L1):                   # output position
        for k in range(3):
            j = l + k - 1                 # input position (padding -> skip)
            if 0 <= j < L1:
                blk = wdw1[k][:, None] * wpw1          # diag(dw) @ pw, (32, 64)
                w2bd = w2bd.at[32 * j:32 * (j + 1), 64 * l:64 * (l + 1)].set(blk)
    b2rep = jnp.tile(b2, L1)

    # stage 3: stride-2 dw_conv2 folded into pw_conv2 (+bn3); only the L2 kept
    # output positions get blocks (stride-2 selection baked into the weight).
    wdw2 = jnp.transpose(tp["dw2_w"][:, 0, :], (1, 0))                 # (3, 64)
    wpw2 = jnp.transpose(tp["pw2_w"][:, :, 0], (1, 0)) * s3[None, :]   # (64, 128)
    b3 = tp["dw2_b"] @ wpw2 + tp["pw2_b"] * s3 + t3
    w3bd = jnp.zeros((L1 * 64, L2 * 128), f32)
    for o in range(L2):                   # stride-2 output position
        for k in range(3):
            j = 2 * o + k - 1
            if 0 <= j < L1:
                blk = wdw2[k][:, None] * wpw2
                w3bd = w3bd.at[64 * j:64 * (j + 1), 128 * o:128 * (o + 1)].set(blk)
    b3rep = jnp.tile(b3, L2)

    # stage 4: global-average-pool folded into fc; classes on sublanes.
    wfc = jnp.zeros((NC_PAD, L2 * 128), f32)
    for o in range(L2):
        wfc = wfc.at[:NUM_CLASSES, 128 * o:128 * (o + 1)].set(tp["fc_w"] / L2)
    bfc = jnp.zeros((NC_PAD, 1), f32).at[:NUM_CLASSES, 0].set(tp["fc_b"])

    row = lambda v: v[None, :].astype(f32)
    return [
        w1bd.astype(bf16), row(b1rep),
        w2bd.astype(bf16), row(b2rep),
        w3bd.astype(bf16), row(b3rep),
        wfc.astype(bf16), bfc,
    ]


# ---------------- pure-JAX reference (PyTorch semantics, eval-mode BN) ------
def _conv1d(x, w, b, stride, pad, groups=1):
    y = lax.conv_general_dilated(
        x, w, window_strides=(stride,), padding=[(pad, pad)],
        dimension_numbers=("NCH", "OIH", "NCH"), feature_group_count=groups)
    return y + b[None, :, None]


def reference_forward(x, tp):
    s1, t1 = _bn_fold(tp["bn1_g"], tp["bn1_b"])
    s2, t2 = _bn_fold(tp["bn2_g"], tp["bn2_b"])
    s3, t3 = _bn_fold(tp["bn3_g"], tp["bn3_b"])
    h = _conv1d(x, tp["conv1_w"], tp["conv1_b"], 2, 1)
    h = jnp.maximum(h * s1[None, :, None] + t1[None, :, None], 0.0)
    h = _conv1d(h, tp["dw1_w"], tp["dw1_b"], 1, 1, groups=32)
    h = _conv1d(h, tp["pw1_w"], tp["pw1_b"], 1, 0)
    h = jnp.maximum(h * s2[None, :, None] + t2[None, :, None], 0.0)
    h = _conv1d(h, tp["dw2_w"], tp["dw2_b"], 2, 1, groups=64)
    h = _conv1d(h, tp["pw2_w"], tp["pw2_b"], 1, 0)
    h = jnp.maximum(h * s3[None, :, None] + t3[None, :, None], 0.0)
    pooled = jnp.mean(h, axis=-1)                          # (B, 128)
    return pooled @ tp["fc_w"].T + tp["fc_b"][None, :]


if __name__ == "__main__":
    key = jax.random.PRNGKey(0)
    kp, kx = jax.random.split(key)
    torch_params = make_torch_params(kp)
    kernel_params = to_kernel_params(torch_params)

    B = 2
    x = jax.random.normal(kx, (B, IN_CH, L_IN), jnp.float32)   # PyTorch NCW

    out = jax.block_until_ready(mobilenet1d_forward(x, kernel_params))
    ref = jax.block_until_ready(reference_forward(x, torch_params))

    assert out.shape == (B, NUM_CLASSES), out.shape
    # bf16 matmul operands (per perf review) -> relaxed tolerance vs f32 ref.
    if not bool(jnp.allclose(out, ref, atol=3e-2, rtol=3e-2)):
        raise AssertionError(f"mismatch: pallas={out}\nref={ref}")
    print("KERNEL_OK")
</pallas_src>

<mosaic_0001>
module attributes {stable_mosaic.version = 11 : i64} {
  func.func @mobilenet1d_kernel(%arg0: i32, %arg1: memref<8x72xbf16, #tpu.memory_space<vmem>>, %arg2: memref<72x256xbf16, #tpu.memory_space<vmem>>, %arg3: memref<1x256xf32, #tpu.memory_space<vmem>>, %arg4: memref<256x512xbf16, #tpu.memory_space<vmem>>, %arg5: memref<1x512xf32, #tpu.memory_space<vmem>>, %arg6: memref<512x512xbf16, #tpu.memory_space<vmem>>, %arg7: memref<1x512xf32, #tpu.memory_space<vmem>>, %arg8: memref<8x512xbf16, #tpu.memory_space<vmem>>, %arg9: memref<8x1xf32, #tpu.memory_space<vmem>>, %arg10: memref<8x8xf32, #tpu.memory_space<vmem>>) attributes {dimension_semantics = [#tpu.dimension_semantics<parallel>], iteration_bounds = array<i64: 1>, scalar_prefetch = 0 : i64, scratch_operands = 0 : i64, tpu.core_type = #tpu.core_type<tc>, window_params = [{transform_indices = @transform_0, window_bounds = array<i64: 8, 72>}, {pipeline_mode = #tpu.pipeline_mode<synchronous>, transform_indices = @transform_1, window_bounds = array<i64: 72, 256>}, {pipeline_mode = #tpu.pipeline_mode<synchronous>, transform_indices = @transform_2, window_bounds = array<i64: 1, 256>}, {pipeline_mode = #tpu.pipeline_mode<synchronous>, transform_indices = @transform_3, window_bounds = array<i64: 256, 512>}, {pipeline_mode = #tpu.pipeline_mode<synchronous>, transform_indices = @transform_4, window_bounds = array<i64: 1, 512>}, {pipeline_mode = #tpu.pipeline_mode<synchronous>, transform_indices = @transform_5, window_bounds = array<i64: 512, 512>}, {pipeline_mode = #tpu.pipeline_mode<synchronous>, transform_indices = @transform_6, window_bounds = array<i64: 1, 512>}, {pipeline_mode = #tpu.pipeline_mode<synchronous>, transform_indices = @transform_7, window_bounds = array<i64: 8, 512>}, {pipeline_mode = #tpu.pipeline_mode<synchronous>, transform_indices = @transform_8, window_bounds = array<i64: 8, 1>}, {transform_indices = @transform_9, window_bounds = array<i64: 8, 8>}]} {
    %c0 = arith.constant 0 : index
    %c0_0 = arith.constant 0 : index
    %0 = vector.load %arg1[%c0, %c0_0] : memref<8x72xbf16, #tpu.memory_space<vmem>>, vector<8x72xbf16>
    %c0_1 = arith.constant 0 : index
    %c0_2 = arith.constant 0 : index
    %1 = vector.load %arg2[%c0_1, %c0_2] : memref<72x256xbf16, #tpu.memory_space<vmem>>, vector<72x256xbf16>
    %cst = arith.constant dense<0.000000e+00> : vector<8x256xf32>
    %2 = tpu.matmul %0, %1, %cst {dimension_numbers = #tpu.dot_dimension_numbers<[1], [0], [0], [1], [0, 0, 1, 1], [], []>} : vector<8x72xbf16>, vector<72x256xbf16>, vector<8x256xf32> -> vector<8x256xf32>
    %c0_3 = arith.constant 0 : index
    %c0_4 = arith.constant 0 : index
    %3 = vector.load %arg3[%c0_3, %c0_4] : memref<1x256xf32, #tpu.memory_space<vmem>>, vector<1x256xf32>
    %4 = vector.broadcast %3 : vector<1x256xf32> to vector<8x256xf32>
    %5 = arith.addf %2, %4 : vector<8x256xf32>
    %cst_5 = arith.constant 0.000000e+00 : f32
    %6 = vector.broadcast %cst_5 : f32 to vector<8x256xf32>
    %7 = arith.maximumf %5, %6 : vector<8x256xf32>
    %8 = arith.truncf %7 : vector<8x256xf32> to vector<8x256xbf16>
    %c0_6 = arith.constant 0 : index
    %c0_7 = arith.constant 0 : index
    %9 = vector.load %arg4[%c0_6, %c0_7] : memref<256x512xbf16, #tpu.memory_space<vmem>>, vector<256x512xbf16>
    %cst_8 = arith.constant dense<0.000000e+00> : vector<8x512xf32>
    %10 = tpu.matmul %8, %9, %cst_8 {dimension_numbers = #tpu.dot_dimension_numbers<[1], [0], [0], [1], [0, 0, 1, 1], [], []>} : vector<8x256xbf16>, vector<256x512xbf16>, vector<8x512xf32> -> vector<8x512xf32>
    %c0_9 = arith.constant 0 : index
    %c0_10 = arith.constant 0 : index
    %11 = vector.load %arg5[%c0_9, %c0_10] : memref<1x512xf32, #tpu.memory_space<vmem>>, vector<1x512xf32>
    %12 = vector.broadcast %11 : vector<1x512xf32> to vector<8x512xf32>
    %13 = arith.addf %10, %12 : vector<8x512xf32>
    %cst_11 = arith.constant 0.000000e+00 : f32
    %14 = vector.broadcast %cst_11 : f32 to vector<8x512xf32>
    %15 = arith.maximumf %13, %14 : vector<8x512xf32>
    %16 = arith.truncf %15 : vector<8x512xf32> to vector<8x512xbf16>
    %c0_12 = arith.constant 0 : index
    %c0_13 = arith.constant 0 : index
    %17 = vector.load %arg6[%c0_12, %c0_13] : memref<512x512xbf16, #tpu.memory_space<vmem>>, vector<512x512xbf16>
    %cst_14 = arith.constant dense<0.000000e+00> : vector<8x512xf32>
    %18 = tpu.matmul %16, %17, %cst_14 {dimension_numbers = #tpu.dot_dimension_numbers<[1], [0], [0], [1], [0, 0, 1, 1], [], []>} : vector<8x512xbf16>, vector<512x512xbf16>, vector<8x512xf32> -> vector<8x512xf32>
    %c0_15 = arith.constant 0 : index
    %c0_16 = arith.constant 0 : index
    %19 = vector.load %arg7[%c0_15, %c0_16] : memref<1x512xf32, #tpu.memory_space<vmem>>, vector<1x512xf32>
    %20 = vector.broadcast %19 : vector<1x512xf32> to vector<8x512xf32>
    %21 = arith.addf %18, %20 : vector<8x512xf32>
    %cst_17 = arith.constant 0.000000e+00 : f32
    %22 = vector.broadcast %cst_17 : f32 to vector<8x512xf32>
    %23 = arith.maximumf %21, %22 : vector<8x512xf32>
    %c0_18 = arith.constant 0 : index
    %c0_19 = arith.constant 0 : index
    %24 = vector.load %arg8[%c0_18, %c0_19] : memref<8x512xbf16, #tpu.memory_space<vmem>>, vector<8x512xbf16>
    %25 = arith.truncf %23 : vector<8x512xf32> to vector<8x512xbf16>
    %cst_20 = arith.constant dense<0.000000e+00> : vector<8x8xf32>
    %26 = tpu.matmul %24, %25, %cst_20 {dimension_numbers = #tpu.dot_dimension_numbers<[1], [1], [0], [0], [0, 0, 1, 0], [], []>} : vector<8x512xbf16>, vector<8x512xbf16>, vector<8x8xf32> -> vector<8x8xf32>
    %c0_21 = arith.constant 0 : index
    %c0_22 = arith.constant 0 : index
    %27 = vector.load %arg9[%c0_21, %c0_22] : memref<8x1xf32, #tpu.memory_space<vmem>>, vector<8x1xf32>
    %28 = vector.broadcast %27 : vector<8x1xf32> to vector<8x8xf32>
    %29 = arith.addf %26, %28 : vector<8x8xf32>
    %c0_23 = arith.constant 0 : index
    %c0_24 = arith.constant 0 : index
    %30 = vector.load %arg10[%c0_23, %c0_24] : memref<8x8xf32, #tpu.memory_space<vmem>>, vector<8x8xf32>
    tpu.vector_store %arg10[%c0_23, %c0_24], %29 {strides = array<i32>} : memref<8x8xf32, #tpu.memory_space<vmem>>, vector<8x8xf32>,
    return
  }
  func.func @transform_0(%arg0: i32) -> (i32, i32) {
    %c0_i32 = arith.constant 0 : i32
    %c0_i32_0 = arith.constant 0 : i32
    return %arg0, %c0_i32 : i32, i32
  }
  func.func @transform_1(%arg0: i32) -> (i32, i32) {
    %c0_i32 = arith.constant 0 : i32
    %c0_i32_0 = arith.constant 0 : i32
    %c0_i32_1 = arith.constant 0 : i32
    return %c0_i32, %c0_i32_0 : i32, i32
  }
  func.func @transform_2(%arg0: i32) -> (i32, i32) {
    %c0_i32 = arith.constant 0 : i32
    %c0_i32_0 = arith.constant 0 : i32
    %c0_i32_1 = arith.constant 0 : i32
    return %c0_i32, %c0_i32_0 : i32, i32
  }
  func.func @transform_3(%arg0: i32) -> (i32, i32) {
    %c0_i32 = arith.constant 0 : i32
    %c0_i32_0 = arith.constant 0 : i32
    %c0_i32_1 = arith.constant 0 : i32
    return %c0_i32, %c0_i32_0 : i32, i32
  }
  func.func @transform_4(%arg0: i32) -> (i32, i32) {
    %c0_i32 = arith.constant 0 : i32
    %c0_i32_0 = arith.constant 0 : i32
    %c0_i32_1 = arith.constant 0 : i32
    return %c0_i32, %c0_i32_0 : i32, i32
  }
  func.func @transform_5(%arg0: i32) -> (i32, i32) {
    %c0_i32 = arith.constant 0 : i32
    %c0_i32_0 = arith.constant 0 : i32
    %c0_i32_1 = arith.constant 0 : i32
    return %c0_i32, %c0_i32_0 : i32, i32
  }
  func.func @transform_6(%arg0: i32) -> (i32, i32) {
    %c0_i32 = arith.constant 0 : i32
    %c0_i32_0 = arith.constant 0 : i32
    %c0_i32_1 = arith.constant 0 : i32
    return %c0_i32, %c0_i32_0 : i32, i32
  }
  func.func @transform_7(%arg0: i32) -> (i32, i32) {
    %c0_i32 = arith.constant 0 : i32
    %c0_i32_0 = arith.constant 0 : i32
    %c0_i32_1 = arith.constant 0 : i32
    return %c0_i32, %c0_i32_0 : i32, i32
  }
  func.func @transform_8(%arg0: i32) -> (i32, i32) {
    %c0_i32 = arith.constant 0 : i32
    %c0_i32_0 = arith.constant 0 : i32
    %c0_i32_1 = arith.constant 0 : i32
    return %c0_i32, %c0_i32_0 : i32, i32
  }
  func.func @transform_9(%arg0: i32) -> (i32, i32) {
    %c0_i32 = arith.constant 0 : i32
    %c0_i32_0 = arith.constant 0 : i32
    return %c0_i32, %arg0 : i32, i32
  }
}

</mosaic_0001>

<llo_original>
// kernel: tpu_custom_call.1
$region0: #{tpu_custom_call.1}
  #allocation0 [shape = 'u32[]', space=smem, size = 0x4, offset = 0x4, fixed_abs, tag = 'smem constant byte address 0x4 - core index']
  #allocation1 [shape = 'u32[144,128]{1,0:T(1,128)}', space=vmem, size = 0x12000, scoped, tag = 'internal scratch']
  %s0 = inlined_call_operand.vmem [shape: bf16[8,72], index: 0, kind: input, shape index: {}]
  %s1 = inlined_call_operand.hbm [shape: bf16[72,256], index: 1, kind: input, shape index: {}]
  %s2 = inlined_call_operand.vmem [shape: f32[1,256], index: 2, kind: input, shape index: {}]
  %s3 = inlined_call_operand.hbm [shape: bf16[256,512], index: 3, kind: input, shape index: {}]
  %s4 = inlined_call_operand.vmem [shape: f32[1,512], index: 4, kind: input, shape index: {}]
  %s5 = inlined_call_operand.hbm [shape: bf16[512,512], index: 5, kind: input, shape index: {}]
  %s6 = inlined_call_operand.vmem [shape: f32[1,512], index: 6, kind: input, shape index: {}]
  %s7 = inlined_call_operand.vmem [shape: bf16[8,512], index: 7, kind: input, shape index: {}]
  %s8 = inlined_call_operand.vmem [shape: f32[8,1], index: 8, kind: input, shape index: {}]
  %s9 = inlined_call_operand.hbm [shape: f32[8,8], index: 9, kind: output, shape index: {}]
  %s10 = sld [smem:[#allocation0]]
  $region58: #{tpu_custom_call.1} parent=0
    _
  %s12 = ssub.s32 1, %s10
  %s13 = scalar_select 0, %s12, %s10
  $region1: #{tpu_custom_call.1} parent=0
    #allocation2 [shape = 'u8[36864]{0}', space=vmem, size = 0x9000, scoped, tag = 'input window, operand 1, single buffered']
    #allocation3 [shape = 's32[1]{0}', space=sflag, size = 0x4, scoped, tag = 'scoped memory for tpu_custom_call.1']
    #allocation4 [shape = 's32[1]{0}', space=sflag, size = 0x4, scoped, tag = 'scoped memory for tpu_custom_call.1']
    #allocation5 [shape = 'u8[262144]{0}', space=vmem, size = 0x40000, scoped, tag = 'input window, operand 3, single buffered']
    #allocation6 [shape = 's32[1]{0}', space=sflag, size = 0x4, scoped, tag = 'scoped memory for tpu_custom_call.1']
    #allocation7 [shape = 'u8[524288]{0}', space=vmem, size = 0x80000, scoped, tag = 'input window, operand 5, single buffered']
    #allocation8 [shape = 'u8[4096]{0}', space=vmem, size = 0x1000, scoped, tag = 'output window, operand 0, single buffered']
    %14 = vsyncpa [#allocation3], 0
    %15 = vsyncpa [#allocation6], 0
    %16 = vsyncpa [#allocation4], 0
    // Predicated region
    $region2: #{tpu_custom_call.1} parent=1 // pred_check
      _
    $region3: #{tpu_custom_call.1} parent=1 // pred_check_branch
      %18 = sbr.rel (0) target = $region5
    $region4: #{tpu_custom_call.1} parent=1 // pred_region
      _
    $region5: #{tpu_custom_call.1} parent=1 // pred_fallthru
      _
    // Predicated region
    $region6: #{tpu_custom_call.1} parent=1 // pred_check
      _
    $region7: #{tpu_custom_call.1} parent=1 // pred_check_branch
      %20 = sbr.rel (0) target = $region9
    $region8: #{tpu_custom_call.1} parent=1 // pred_region
      %s22 = ssub.s32 1152, 1152
      %23 = vsyncadd [#allocation3], %s22
      %s24 = sshll.u32 [#allocation2], 4
      %s25 = int_to_ptr.vmem [resolvable:$true] %s24
      %30 = dma.hbm_to_vmem [thread:$0]  %s1, 1152, %s25, [#allocation3], 128, 128, 8
    $region9: #{tpu_custom_call.1} parent=1 // pred_fallthru
      _
    // Predicated region
    $region10: #{tpu_custom_call.1} parent=1 // pred_check
      _
    $region11: #{tpu_custom_call.1} parent=1 // pred_check_branch
      %32 = sbr.rel (0) target = $region13
    $region12: #{tpu_custom_call.1} parent=1 // pred_region
      _
    $region13: #{tpu_custom_call.1} parent=1 // pred_fallthru
      _
    // Predicated region
    $region14: #{tpu_custom_call.1} parent=1 // pred_check
      _
    $region15: #{tpu_custom_call.1} parent=1 // pred_check_branch
      %34 = sbr.rel (0) target = $region17
    $region16: #{tpu_custom_call.1} parent=1 // pred_region
      %s36 = ssub.s32 8192, 8192
      %37 = vsyncadd [#allocation6], %s36
      %s38 = sshll.u32 [#allocation5], 4
      %s39 = int_to_ptr.vmem [resolvable:$true] %s38
      %44 = dma.hbm_to_vmem [thread:$0]  %s3, 8192, %s39, [#allocation6], 256, 256, 16
    $region17: #{tpu_custom_call.1} parent=1 // pred_fallthru
      _
    // Predicated region
    $region18: #{tpu_custom_call.1} parent=1 // pred_check
      _
    $region19: #{tpu_custom_call.1} parent=1 // pred_check_branch
      %46 = sbr.rel (0) target = $region21
    $region20: #{tpu_custom_call.1} parent=1 // pred_region
      _
    $region21: #{tpu_custom_call.1} parent=1 // pred_fallthru
      _
    // Predicated region
    $region22: #{tpu_custom_call.1} parent=1 // pred_check
      _
    $region23: #{tpu_custom_call.1} parent=1 // pred_check_branch
      %48 = sbr.rel (0) target = $region25
    $region24: #{tpu_custom_call.1} parent=1 // pred_region
      %s50 = ssub.s32 16384, 16384
      %51 = vsyncadd [#allocation6], %s50
      %s52 = sshll.u32 [#allocation7], 4
      %s53 = int_to_ptr.vmem [resolvable:$true] %s52
      %58 = dma.hbm_to_vmem [thread:$0]  %s5, 16384, %s53, [#allocation6], 256, 256, 16
    $region25: #{tpu_custom_call.1} parent=1 // pred_fallthru
      _
    // Predicated region
    $region26: #{tpu_custom_call.1} parent=1 // pred_check
      _
    $region27: #{tpu_custom_call.1} parent=1 // pred_check_branch
      %60 = sbr.rel (0) target = $region29
    $region28: #{tpu_custom_call.1} parent=1 // pred_region
      _
    $region29: #{tpu_custom_call.1} parent=1 // pred_fallthru
      _
    // Predicated region
    $region30: #{tpu_custom_call.1} parent=1 // pred_check
      _
    $region31: #{tpu_custom_call.1} parent=1 // pred_check_branch
      %62 = sbr.rel (0) target = $region33
    $region32: #{tpu_custom_call.1} parent=1 // pred_region
      _
    $region33: #{tpu_custom_call.1} parent=1 // pred_fallthru
      _
    // Predicated region
    $region34: #{tpu_custom_call.1} parent=1 // pred_check
      _
    $region35: #{tpu_custom_call.1} parent=1 // pred_check_branch
      %64 = sbr.rel (0) target = $region37
    $region36: #{tpu_custom_call.1} parent=1 // pred_region
      _
    $region37: #{tpu_custom_call.1} parent=1 // pred_fallthru
      _
    // Predicated region
    $region38: #{tpu_custom_call.1} parent=1 // pred_check
      _
    $region39: #{tpu_custom_call.1} parent=1 // pred_check_branch
      %66 = sbr.rel (0) target = $region41
    $region40: #{tpu_custom_call.1} parent=1 // pred_region
      %67 = dma.done [#allocation3], 1152
    $region41: #{tpu_custom_call.1} parent=1 // pred_fallthru
      _
    // Predicated region
    $region42: #{tpu_custom_call.1} parent=1 // pred_check
      _
    $region43: #{tpu_custom_call.1} parent=1 // pred_check_branch
      %69 = sbr.rel (0) target = $region45
    $region44: #{tpu_custom_call.1} parent=1 // pred_region
      %70 = dma.done [#allocation6], 8192
    $region45: #{tpu_custom_call.1} parent=1 // pred_fallthru
      _
    // Predicated region
    $region46: #{tpu_custom_call.1} parent=1 // pred_check
      _
    $region47: #{tpu_custom_call.1} parent=1 // pred_check_branch
      %72 = sbr.rel (0) target = $region49
    $region48: #{tpu_custom_call.1} parent=1 // pred_region
      %73 = dma.done [#allocation6], 16384
    $region49: #{tpu_custom_call.1} parent=1 // pred_fallthru
      _
    %v75 = vld [vmem:[%s0] sm:$0xf]
    %v76 = vld [vmem:[#allocation2] sm:$0xff]
    %v77 = vld [vmem:[#allocation2 + $0x8] sm:$0xff]
    %v78 = vld [vmem:[#allocation2 + $0x10] sm:$0xff]
    %v79 = vld [vmem:[#allocation2 + $0x18] sm:$0xff]
    %v80 = vld [vmem:[#allocation2 + $0x20] sm:$0xff]
    %v81 = vld [vmem:[#allocation2 + $0x28] sm:$0xff]
    %v82 = vld [vmem:[#allocation2 + $0x30] sm:$0xff]
    %v83 = vld [vmem:[#allocation2 + $0x38] sm:$0xff]
    %v84 = vld [vmem:[#allocation2 + $0x40] sm:$0xff]
    %v85 = vld [vmem:[%s2] sm:$0x3]
    %v87 = vlaneseq
    %v88 = vshrl.u32 %v87, 7
    %v89 = vsub.s32 0, %v88
    %v90 = vrot.slane %v85, %v89
    %v91 = vlaneseq
    %v92 = vshrl.u32 %v91, 7
    %v93 = vsub.s32 1, %v92
    %v94 = vrot.slane %v85, %v93
    %v106 = vunpack.c.l.b16 %v76
    %v107 = vunpack.c.h.b16 %v76
    %v108 = vunpack.c.l.b16 %v77
    %v109 = vunpack.c.h.b16 %v77
    %v110 = vunpack.c.l.b16 %v78
    %v111 = vunpack.c.h.b16 %v78
    %v112 = vunpack.c.l.b16 %v79
    %v113 = vunpack.c.h.b16 %v79
    %v114 = vunpack.c.l.b16 %v80
    %v115 = vunpack.c.h.b16 %v80
    %v116 = vunpack.c.l.b16 %v81
    %v117 = vunpack.c.h.b16 %v81
    %v118 = vunpack.c.l.b16 %v82
    %v119 = vunpack.c.h.b16 %v82
    %v120 = vunpack.c.l.b16 %v83
    %v121 = vunpack.c.h.b16 %v83
    %v122 = vunpack.c.l.b16 %v84
    %v123 = vunpack.c.h.b16 %v84
    %v124 = vpack.c.b16 %v108, %v106
    %v125 = vpack.c.b16 %v109, %v107
    %v126 = vpack.c.b16 %v112, %v110
    %v127 = vpack.c.b16 %v113, %v111
    %v128 = vpack.c.b16 %v116, %v114
    %v129 = vpack.c.b16 %v117, %v115
    %v130 = vpack.c.b16 %v120, %v118
    %v131 = vpack.c.b16 %v121, %v119
    %v132 = vpack.c.b16 %v122, %v122
    %v133 = vpack.c.b16 %v123, %v123
    %vm142 = vcmask 588800
    %v144 = vsel %vm142, %v75, 0
    %vm146 = vcmask 1043456
    %v148 = vsel %vm146, %v132, 0
    %v151 = vsel %vm146, %v133, 0
    %153 = vmatprep.subr.bf16.mxu0 %v125
    %154 = vmatpush1.bf16.msra.mxu0 %v124
    %155 = vmatprep.subr.bf16.mxu0 %v127
    %156 = vmatpush1.bf16.msra.mxu0 %v126
    %157 = vmatprep.subr.bf16.mxu0 %v129
    %158 = vmatpush1.bf16.msra.mxu0 %v128
    %159 = vmatprep.subr.bf16.mxu0 %v131
    %160 = vmatpush1.bf16.msra.mxu0 %v130
    %161 = vmatprep.subr.bf16.mxu0 %v151
    %162 = vmatpush1.bf16.msra.mxu0 %v148
    %163 = vmatprep.subr.bf16.mxu0 0
    %164 = vmatpush1.bf16.msra.mxu0 0
    %165 = vmatprep.subr.bf16.mxu0 0
    %166 = vmatpush1.bf16.msra.mxu0 0
    %167 = vmatprep.subr.bf16.mxu0 0
    %168 = vmatpush1.bf16.msra.mxu0 0
    %169 = vmatprep.subr.bf16.mxu0 0
    %170 = vmatpush1.bf16.msra.mxu0 0
    %171 = vmatprep.subr.bf16.mxu0 0
    %172 = vmatpush1.bf16.msra.mxu0 0
    %173 = vmatprep.subr.bf16.mxu0 0
    %174 = vmatpush1.bf16.msra.mxu0 0
    %175 = vmatprep.subr.bf16.mxu0 0
    %176 = vmatpush1.bf16.msra.mxu0 0
    %177 = vmatprep.subr.bf16.mxu0 0
    %178 = vmatpush1.bf16.msra.mxu0 0
    %179 = vmatprep.subr.bf16.mxu0 0
    %180 = vmatpush1.bf16.msra.mxu0 0
    %181 = vmatprep.subr.bf16.mxu0 0
    %182 = vmatpush1.bf16.msra.mxu0 0
    %183 = vmatprep.subr.bf16.mxu0 0
    %184 = vmatpush1.bf16.msra.mxu0 0
    %185 = vmatprep.mubr.bf16.mxu0 0
    %186 = vmatmul.mubr.bf16.gmra.mrb[0].mxu0 %v144
    %v187 = vpop.f32.mrb[0].mxu0
    %v188 = vadd.f32 %v90, %v187
    %v189 = vpop.f32.mrb[0].mxu0
    %v190 = vadd.f32 %v94, %v189
    %v191 = vpop.f32.mrb[0].mxu0
    %v192 = vpop.f32.mrb[0].mxu0
    %193 = vdwg.mxu0
    %v194 = vmax.f32 %v188, 0.0
    %v195 = vmax.f32 %v190, 0.0
    %v196 = vpack.c.bf16 %v194, %v194
    %v197 = vpack.c.bf16 %v195, %v195
    %v198 = vld [vmem:[#allocation5] sm:$0xff]
    %v199 = vld [vmem:[#allocation5 + $0x8] sm:$0xff]
    %v200 = vld [vmem:[#allocation5 + $0x10] sm:$0xff]
    %v201 = vld [vmem:[#allocation5 + $0x18] sm:$0xff]
    %v202 = vld [vmem:[#allocation5 + $0x20] sm:$0xff]
    %v203 = vld [vmem:[#allocation5 + $0x28] sm:$0xff]
    %v204 = vld [vmem:[#allocation5 + $0x30] sm:$0xff]
    %v205 = vld [vmem:[#allocation5 + $0x38] sm:$0xff]
    %v206 = vld [vmem:[#allocation5 + $0x40] sm:$0xff]
    %v207 = vld [vmem:[#allocation5 + $0x48] sm:$0xff]
    %v208 = vld [vmem:[#allocation5 + $0x50] sm:$0xff]
    %v209 = vld [vmem:[#allocation5 + $0x58] sm:$0xff]
    %v210 = vld [vmem:[#allocation5 + $0x60] sm:$0xff]
    %v211 = vld [vmem:[#allocation5 + $0x68] sm:$0xff]
    %v212 = vld [vmem:[#allocation5 + $0x70] sm:$0xff]
    %v213 = vld [vmem:[#allocation5 + $0x78] sm:$0xff]
    %v214 = vld [vmem:[#allocation5 + $0x80] sm:$0xff]
    %v215 = vld [vmem:[#allocation5 + $0x88] sm:$0xff]
    %v216 = vld [vmem:[#allocation5 + $0x90] sm:$0xff]
    %v217 = vld [vmem:[#allocation5 + $0x98] sm:$0xff]
    %v218 = vld [vmem:[#allocation5 + $0xa0] sm:$0xff]
    %v219 = vld [vmem:[#allocation5 + $0xa8] sm:$0xff]
    %v220 = vld [vmem:[#allocation5 + $0xb0] sm:$0xff]
    %v221 = vld [vmem:[#allocation5 + $0xb8] sm:$0xff]
    %v222 = vld [vmem:[#allocation5 + $0xc0] sm:$0xff]
    %v223 = vld [vmem:[#allocation5 + $0xc8] sm:$0xff]
    %v224 = vld [vmem:[#allocation5 + $0xd0] sm:$0xff]
    %v225 = vld [vmem:[#allocation5 + $0xd8] sm:$0xff]
    %v226 = vld [vmem:[#allocation5 + $0xe0] sm:$0xff]
    %v227 = vld [vmem:[#allocation5 + $0xe8] sm:$0xff]
    %v228 = vld [vmem:[#allocation5 + $0xf0] sm:$0xff]
    %v229 = vld [vmem:[#allocation5 + $0xf8] sm:$0xff]
    %v230 = vld [vmem:[#allocation5 + $0x100] sm:$0xff]
    %v231 = vld [vmem:[#allocation5 + $0x108] sm:$0xff]
    %v232 = vld [vmem:[#allocation5 + $0x110] sm:$0xff]
    %v233 = vld [vmem:[#allocation5 + $0x118] sm:$0xff]
    %v234 = vld [vmem:[#allocation5 + $0x120] sm:$0xff]
    %v235 = vld [vmem:[#allocation5 + $0x128] sm:$0xff]
    %v236 = vld [vmem:[#allocation5 + $0x130] sm:$0xff]
    %v237 = vld [vmem:[#allocation5 + $0x138] sm:$0xff]
    %v238 = vld [vmem:[#allocation5 + $0x140] sm:$0xff]
    %v239 = vld [vmem:[#allocation5 + $0x148] sm:$0xff]
    %v240 = vld [vmem:[#allocation5 + $0x150] sm:$0xff]
    %v241 = vld [vmem:[#allocation5 + $0x158] sm:$0xff]
    %v242 = vld [vmem:[#allocation5 + $0x160] sm:$0xff]
    %v243 = vld [vmem:[#allocation5 + $0x168] sm:$0xff]
    %v244 = vld [vmem:[#allocation5 + $0x170] sm:$0xff]
    %v245 = vld [vmem:[#allocation5 + $0x178] sm:$0xff]
    %v246 = vld [vmem:[#allocation5 + $0x180] sm:$0xff]
    %v247 = vld [vmem:[#allocation5 + $0x188] sm:$0xff]
    %v248 = vld [vmem:[#allocation5 + $0x190] sm:$0xff]
    %v249 = vld [vmem:[#allocation5 + $0x198] sm:$0xff]
    %v250 = vld [vmem:[#allocation5 + $0x1a0] sm:$0xff]
    %v251 = vld [vmem:[#allocation5 + $0x1a8] sm:$0xff]
    %v252 = vld [vmem:[#allocation5 + $0x1b0] sm:$0xff]
    %v253 = vld [vmem:[#allocation5 + $0x1b8] sm:$0xff]
    %v254 = vld [vmem:[#allocation5 + $0x1c0] sm:$0xff]
    %v255 = vld [vmem:[#allocation5 + $0x1c8] sm:$0xff]
    %v256 = vld [vmem:[#allocation5 + $0x1d0] sm:$0xff]
    %v257 = vld [vmem:[#allocation5 + $0x1d8] sm:$0xff]
    %v258 = vld [vmem:[#allocation5 + $0x1e0] sm:$0xff]
    %v259 = vld [vmem:[#allocation5 + $0x1e8] sm:$0xff]
    %v260 = vld [vmem:[#allocation5 + $0x1f0] sm:$0xff]
    %v261 = vld [vmem:[#allocation5 + $0x1f8] sm:$0xff]
    %v262 = vld [vmem:[%s4] sm:$0xf]
    %v264 = vlaneseq
    %v265 = vshrl.u32 %v264, 7
    %v266 = vsub.s32 0, %v265
    %v267 = vrot.slane %v262, %v266
    %v268 = vlaneseq
    %v269 = vshrl.u32 %v268, 7
    %v270 = vsub.s32 1, %v269
    %v271 = vrot.slane %v262, %v270
    %v272 = vlaneseq
    %v273 = vshrl.u32 %v272, 7
    %v274 = vsub.s32 2, %v273
    %v275 = vrot.slane %v262, %v274
    %v276 = vlaneseq
    %v277 = vshrl.u32 %v276, 7
    %v278 = vsub.s32 3, %v277
    %v279 = vrot.slane %v262, %v278
    %v348 = vunpack.c.l.b16 %v198
    %v349 = vunpack.c.h.b16 %v198
    %v350 = vunpack.c.l.b16 %v199
    %v351 = vunpack.c.h.b16 %v199
    %v352 = vunpack.c.l.b16 %v200
    %v353 = vunpack.c.h.b16 %v200
    %v354 = vunpack.c.l.b16 %v201
    %v355 = vunpack.c.h.b16 %v201
    %v356 = vunpack.c.l.b16 %v202
    %v357 = vunpack.c.h.b16 %v202
    %v358 = vunpack.c.l.b16 %v203
    %v359 = vunpack.c.h.b16 %v203
    %v360 = vunpack.c.l.b16 %v204
    %v361 = vunpack.c.h.b16 %v204
    %v362 = vunpack.c.l.b16 %v205
    %v363 = vunpack.c.h.b16 %v205
    %v364 = vunpack.c.l.b16 %v206
    %v365 = vunpack.c.h.b16 %v206
    %v366 = vunpack.c.l.b16 %v207
    %v367 = vunpack.c.h.b16 %v207
    %v368 = vunpack.c.l.b16 %v208
    %v369 = vunpack.c.h.b16 %v208
    %v370 = vunpack.c.l.b16 %v209
    %v371 = vunpack.c.h.b16 %v209
    %v372 = vunpack.c.l.b16 %v210
    %v373 = vunpack.c.h.b16 %v210
    %v374 = vunpack.c.l.b16 %v211
    %v375 = vunpack.c.h.b16 %v211
    %v376 = vunpack.c.l.b16 %v212
    %v377 = vunpack.c.h.b16 %v212
    %v378 = vunpack.c.l.b16 %v213
    %v379 = vunpack.c.h.b16 %v213
    %v380 = vunpack.c.l.b16 %v214
    %v381 = vunpack.c.h.b16 %v214
    %v382 = vunpack.c.l.b16 %v215
    %v383 = vunpack.c.h.b16 %v215
    %v384 = vunpack.c.l.b16 %v216
    %v385 = vunpack.c.h.b16 %v216
    %v386 = vunpack.c.l.b16 %v217
    %v387 = vunpack.c.h.b16 %v217
    %v388 = vunpack.c.l.b16 %v218
    %v389 = vunpack.c.h.b16 %v218
    %v390 = vunpack.c.l.b16 %v219
    %v391 = vunpack.c.h.b16 %v219
    %v392 = vunpack.c.l.b16 %v220
    %v393 = vunpack.c.h.b16 %v220
    %v394 = vunpack.c.l.b16 %v221
    %v395 = vunpack.c.h.b16 %v221
    %v396 = vunpack.c.l.b16 %v222
    %v397 = vunpack.c.h.b16 %v222
    %v398 = vunpack.c.l.b16 %v223
    %v399 = vunpack.c.h.b16 %v223
    %v400 = vunpack.c.l.b16 %v224
    %v401 = vunpack.c.h.b16 %v224
    %v402 = vunpack.c.l.b16 %v225
    %v403 = vunpack.c.h.b16 %v225
    %v404 = vunpack.c.l.b16 %v226
    %v405 = vunpack.c.h.b16 %v226
    %v406 = vunpack.c.l.b16 %v227
    %v407 = vunpack.c.h.b16 %v227
    %v408 = vunpack.c.l.b16 %v228
    %v409 = vunpack.c.h.b16 %v228
    %v410 = vunpack.c.l.b16 %v229
    %v411 = vunpack.c.h.b16 %v229
    %v412 = vunpack.c.l.b16 %v230
    %v413 = vunpack.c.h.b16 %v230
    %v414 = vunpack.c.l.b16 %v231
    %v415 = vunpack.c.h.b16 %v231
    %v416 = vunpack.c.l.b16 %v232
    %v417 = vunpack.c.h.b16 %v232
    %v418 = vunpack.c.l.b16 %v233
    %v419 = vunpack.c.h.b16 %v233
    %v420 = vunpack.c.l.b16 %v234
    %v421 = vunpack.c.h.b16 %v234
    %v422 = vunpack.c.l.b16 %v235
    %v423 = vunpack.c.h.b16 %v235
    %v424 = vunpack.c.l.b16 %v236
    %v425 = vunpack.c.h.b16 %v236
    %v426 = vunpack.c.l.b16 %v237
    %v427 = vunpack.c.h.b16 %v237
    %v428 = vunpack.c.l.b16 %v238
    %v429 = vunpack.c.h.b16 %v238
    %v430 = vunpack.c.l.b16 %v239
    %v431 = vunpack.c.h.b16 %v239
    %v432 = vunpack.c.l.b16 %v240
    %v433 = vunpack.c.h.b16 %v240
    %v434 = vunpack.c.l.b16 %v241
    %v435 = vunpack.c.h.b16 %v241
    %v436 = vunpack.c.l.b16 %v242
    %v437 = vunpack.c.h.b16 %v242
    %v438 = vunpack.c.l.b16 %v243
    %v439 = vunpack.c.h.b16 %v243
    %v440 = vunpack.c.l.b16 %v244
    %v441 = vunpack.c.h.b16 %v244
    %v442 = vunpack.c.l.b16 %v245
    %v443 = vunpack.c.h.b16 %v245
    %v444 = vunpack.c.l.b16 %v246
    %v445 = vunpack.c.h.b16 %v246
    %v446 = vunpack.c.l.b16 %v247
    %v447 = vunpack.c.h.b16 %v247
    %v448 = vunpack.c.l.b16 %v248
    %v449 = vunpack.c.h.b16 %v248
    %v450 = vunpack.c.l.b16 %v249
    %v451 = vunpack.c.h.b16 %v249
    %v452 = vunpack.c.l.b16 %v250
    %v453 = vunpack.c.h.b16 %v250
    %v454 = vunpack.c.l.b16 %v251
    %v455 = vunpack.c.h.b16 %v251
    %v456 = vunpack.c.l.b16 %v252
    %v457 = vunpack.c.h.b16 %v252
    %v458 = vunpack.c.l.b16 %v253
    %v459 = vunpack.c.h.b16 %v253
    %v460 = vunpack.c.l.b16 %v254
    %v461 = vunpack.c.h.b16 %v254
    %v462 = vunpack.c.l.b16 %v255
    %v463 = vunpack.c.h.b16 %v255
    %v464 = vunpack.c.l.b16 %v256
    %v465 = vunpack.c.h.b16 %v256
    %v466 = vunpack.c.l.b16 %v257
    %v467 = vunpack.c.h.b16 %v257
    %v468 = vunpack.c.l.b16 %v258
    %v469 = vunpack.c.h.b16 %v258
    %v470 = vunpack.c.l.b16 %v259
    %v471 = vunpack.c.h.b16 %v259
    %v472 = vunpack.c.l.b16 %v260
    %v473 = vunpack.c.h.b16 %v260
    %v474 = vunpack.c.l.b16 %v261
    %v475 = vunpack.c.h.b16 %v261
    %v476 = vpack.c.b16 %v352, %v348
    %v477 = vpack.c.b16 %v353, %v349
    %v478 = vpack.c.b16 %v354, %v350
    %v479 = vpack.c.b16 %v355, %v351
    %v480 = vpack.c.b16 %v360, %v356
    %v481 = vpack.c.b16 %v361, %v357
    %v482 = vpack.c.b16 %v362, %v358
    %v483 = vpack.c.b16 %v363, %v359
    %v484 = vpack.c.b16 %v368, %v364
    %v485 = vpack.c.b16 %v369, %v365
    %v486 = vpack.c.b16 %v370, %v366
    %v487 = vpack.c.b16 %v371, %v367
    %v488 = vpack.c.b16 %v376, %v372
    %v489 = vpack.c.b16 %v377, %v373
    %v490 = vpack.c.b16 %v378, %v374
    %v491 = vpack.c.b16 %v379, %v375
    %v492 = vpack.c.b16 %v384, %v380
    %v493 = vpack.c.b16 %v385, %v381
    %v494 = vpack.c.b16 %v386, %v382
    %v495 = vpack.c.b16 %v387, %v383
    %v496 = vpack.c.b16 %v392, %v388
    %v497 = vpack.c.b16 %v393, %v389
    %v498 = vpack.c.b16 %v394, %v390
    %v499 = vpack.c.b16 %v395, %v391
    %v500 = vpack.c.b16 %v400, %v396
    %v501 = vpack.c.b16 %v401, %v397
    %v502 = vpack.c.b16 %v402, %v398
    %v503 = vpack.c.b16 %v403, %v399
    %v504 = vpack.c.b16 %v408, %v404
    %v505 = vpack.c.b16 %v409, %v405
    %v506 = vpack.c.b16 %v410, %v406
    %v507 = vpack.c.b16 %v411, %v407
    %v508 = vpack.c.b16 %v416, %v412
    %v509 = vpack.c.b16 %v417, %v413
    %v510 = vpack.c.b16 %v418, %v414
    %v511 = vpack.c.b16 %v419, %v415
    %v512 = vpack.c.b16 %v424, %v420
    %v513 = vpack.c.b16 %v425, %v421
    %v514 = vpack.c.b16 %v426, %v422
    %v515 = vpack.c.b16 %v427, %v423
    %v516 = vpack.c.b16 %v432, %v428
    %v517 = vpack.c.b16 %v433, %v429
    %v518 = vpack.c.b16 %v434, %v430
    %v519 = vpack.c.b16 %v435, %v431
    %v520 = vpack.c.b16 %v440, %v436
    %v521 = vpack.c.b16 %v441, %v437
    %v522 = vpack.c.b16 %v442, %v438
    %v523 = vpack.c.b16 %v443, %v439
    %v524 = vpack.c.b16 %v448, %v444
    %v525 = vpack.c.b16 %v449, %v445
    %v526 = vpack.c.b16 %v450, %v446
    %v527 = vpack.c.b16 %v451, %v447
    %v528 = vpack.c.b16 %v456, %v452
    %v529 = vpack.c.b16 %v457, %v453
    %v530 = vpack.c.b16 %v458, %v454
    %v531 = vpack.c.b16 %v459, %v455
    %v532 = vpack.c.b16 %v464, %v460
    %v533 = vpack.c.b16 %v465, %v461
    %v534 = vpack.c.b16 %v466, %v462
    %v535 = vpack.c.b16 %v467, %v463
    %v536 = vpack.c.b16 %v472, %v468
    %v537 = vpack.c.b16 %v473, %v469
    %v538 = vpack.c.b16 %v474, %v470
    %v539 = vpack.c.b16 %v475, %v471
    %604 = vmatprep.subr.bf16.mxu0 %v477
    %605 = vmatpush1.bf16.msra.mxu0 %v476
    %606 = vmatprep.subr.bf16.mxu0 %v481
    %607 = vmatpush1.bf16.msra.mxu0 %v480
    %608 = vmatprep.subr.bf16.mxu0 %v485
    %609 = vmatpush1.bf16.msra.mxu0 %v484
    %610 = vmatprep.subr.bf16.mxu0 %v489
    %611 = vmatpush1.bf16.msra.mxu0 %v488
    %612 = vmatprep.subr.bf16.mxu0 %v493
    %613 = vmatpush1.bf16.msra.mxu0 %v492
    %614 = vmatprep.subr.bf16.mxu0 %v497
    %615 = vmatpush1.bf16.msra.mxu0 %v496
    %616 = vmatprep.subr.bf16.mxu0 %v501
    %617 = vmatpush1.bf16.msra.mxu0 %v500
    %618 = vmatprep.subr.bf16.mxu0 %v505
    %619 = vmatpush1.bf16.msra.mxu0 %v504
    %620 = vmatprep.subr.bf16.mxu0 %v509
    %621 = vmatpush1.bf16.msra.mxu0 %v508
    %622 = vmatprep.subr.bf16.mxu0 %v513
    %623 = vmatpush1.bf16.msra.mxu0 %v512
    %624 = vmatprep.subr.bf16.mxu0 %v517
    %625 = vmatpush1.bf16.msra.mxu0 %v516
    %626 = vmatprep.subr.bf16.mxu0 %v521
    %627 = vmatpush1.bf16.msra.mxu0 %v520
    %628 = vmatprep.subr.bf16.mxu0 %v525
    %629 = vmatpush1.bf16.msra.mxu0 %v524
    %630 = vmatprep.subr.bf16.mxu0 %v529
    %631 = vmatpush1.bf16.msra.mxu0 %v528
    %632 = vmatprep.subr.bf16.mxu0 %v533
    %633 = vmatpush1.bf16.msra.mxu0 %v532
    %634 = vmatprep.subr.bf16.mxu0 %v537
    %635 = vmatpush1.bf16.msra.mxu0 %v536
    %636 = vmatprep.mubr.bf16.mxu0 %v197
    %637 = vmatmul.mubr.bf16.gmra.mrb[0].mxu0 %v196
    %v638 = vpop.f32.mrb[0].mxu0
    %v639 = vadd.f32 %v267, %v638
    %v640 = vpop.f32.mrb[0].mxu0
    %v641 = vadd.f32 %v271, %v640
    %v642 = vpop.f32.mrb[0].mxu0
    %v643 = vpop.f32.mrb[0].mxu0
    %644 = vdwg.mxu0
    %645 = vmatprep.subr.bf16.mxu0 %v479
    %646 = vmatpush1.bf16.msra.mxu0 %v478
    %647 = vmatprep.subr.bf16.mxu0 %v483
    %648 = vmatpush1.bf16.msra.mxu0 %v482
    %649 = vmatprep.subr.bf16.mxu0 %v487
    %650 = vmatpush1.bf16.msra.mxu0 %v486
    %651 = vmatprep.subr.bf16.mxu0 %v491
    %652 = vmatpush1.bf16.msra.mxu0 %v490
    %653 = vmatprep.subr.bf16.mxu0 %v495
    %654 = vmatpush1.bf16.msra.mxu0 %v494
    %655 = vmatprep.subr.bf16.mxu0 %v499
    %656 = vmatpush1.bf16.msra.mxu0 %v498
    %657 = vmatprep.subr.bf16.mxu0 %v503
    %658 = vmatpush1.bf16.msra.mxu0 %v502
    %659 = vmatprep.subr.bf16.mxu0 %v507
    %660 = vmatpush1.bf16.msra.mxu0 %v506
    %661 = vmatprep.subr.bf16.mxu0 %v511
    %662 = vmatpush1.bf16.msra.mxu0 %v510
    %663 = vmatprep.subr.bf16.mxu0 %v515
    %664 = vmatpush1.bf16.msra.mxu0 %v514
    %665 = vmatprep.subr.bf16.mxu0 %v519
    %666 = vmatpush1.bf16.msra.mxu0 %v518
    %667 = vmatprep.subr.bf16.mxu0 %v523
    %668 = vmatpush1.bf16.msra.mxu0 %v522
    %669 = vmatprep.subr.bf16.mxu0 %v527
    %670 = vmatpush1.bf16.msra.mxu0 %v526
    %671 = vmatprep.subr.bf16.mxu0 %v531
    %672 = vmatpush1.bf16.msra.mxu0 %v530
    %673 = vmatprep.subr.bf16.mxu0 %v535
    %674 = vmatpush1.bf16.msra.mxu0 %v534
    %675 = vmatprep.subr.bf16.mxu0 %v539
    %676 = vmatpush1.bf16.msra.mxu0 %v538
    %677 = vmatprep.mubr.bf16.mxu0 %v197
    %678 = vmatmul.mubr.bf16.gmra.mrb[0].mxu0 %v196
    %v679 = vpop.f32.mrb[0].mxu0
    %v680 = vadd.f32 %v275, %v679
    %v681 = vpop.f32.mrb[0].mxu0
    %v682 = vadd.f32 %v279, %v681
    %v683 = vpop.f32.mrb[0].mxu0
    %v684 = vpop.f32.mrb[0].mxu0
    %685 = vdwg.mxu0
    %v686 = vmax.f32 %v639, 0.0
    %v687 = vmax.f32 %v641, 0.0
    %v688 = vmax.f32 %v680, 0.0
    %v689 = vmax.f32 %v682, 0.0
    %v690 = vpack.c.bf16 %v686, %v686
    %v691 = vpack.c.bf16 %v687, %v687
    %v692 = vpack.c.bf16 %v688, %v688
    %v693 = vpack.c.bf16 %v689, %v689
    %v694 = vld [vmem:[#allocation7] sm:$0xff]
    %v695 = vld [vmem:[#allocation7 + $0x8] sm:$0xff]
    %v696 = vld [vmem:[#allocation7 + $0x10] sm:$0xff]
    %v697 = vld [vmem:[#allocation7 + $0x18] sm:$0xff]
    %v698 = vld [vmem:[#allocation7 + $0x20] sm:$0xff]
    %v699 = vld [vmem:[#allocation7 + $0x28] sm:$0xff]
    %v700 = vld [vmem:[#allocation7 + $0x30] sm:$0xff]
    %v701 = vld [vmem:[#allocation7 + $0x38] sm:$0xff]
    %v702 = vld [vmem:[#allocation7 + $0x40] sm:$0xff]
    %v703 = vld [vmem:[#allocation7 + $0x48] sm:$0xff]
    %v704 = vld [vmem:[#allocation7 + $0x50] sm:$0xff]
    %v705 = vld [vmem:[#allocation7 + $0x58] sm:$0xff]
    %v706 = vld [vmem:[#allocation7 + $0x60] sm:$0xff]
    %v707 = vld [vmem:[#allocation7 + $0x68] sm:$0xff]
    %v708 = vld [vmem:[#allocation7 + $0x70] sm:$0xff]
    %v709 = vld [vmem:[#allocation7 + $0x78] sm:$0xff]
    %v710 = vld [vmem:[#allocation7 + $0x80] sm:$0xff]
    %v711 = vld [vmem:[#allocation7 + $0x88] sm:$0xff]
    %v712 = vld [vmem:[#allocation7 + $0x90] sm:$0xff]
    %v713 = vld [vmem:[#allocation7 + $0x98] sm:$0xff]
    %v714 = vld [vmem:[#allocation7 + $0xa0] sm:$0xff]
    %v715 = vld [vmem:[#allocation7 + $0xa8] sm:$0xff]
    %v716 = vld [vmem:[#allocation7 + $0xb0] sm:$0xff]
    %v717 = vld [vmem:[#allocation7 + $0xb8] sm:$0xff]
    %v718 = vld [vmem:[#allocation7 + $0xc0] sm:$0xff]
    %v719 = vld [vmem:[#allocation7 + $0xc8] sm:$0xff]
    %v720 = vld [vmem:[#allocation7 + $0xd0] sm:$0xff]
    %v721 = vld [vmem:[#allocation7 + $0xd8] sm:$0xff]
    %v722 = vld [vmem:[#allocation7 + $0xe0] sm:$0xff]
    %v723 = vld [vmem:[#allocation7 + $0xe8] sm:$0xff]
    %v724 = vld [vmem:[#allocation7 + $0xf0] sm:$0xff]
    %v725 = vld [vmem:[#allocation7 + $0xf8] sm:$0xff]
    %v726 = vld [vmem:[#allocation7 + $0x100] sm:$0xff]
    %v727 = vld [vmem:[#allocation7 + $0x108] sm:$0xff]
    %v728 = vld [vmem:[#allocation7 + $0x110] sm:$0xff]
    %v729 = vld [vmem:[#allocation7 + $0x118] sm:$0xff]
    %v730 = vld [vmem:[#allocation7 + $0x120] sm:$0xff]
    %v731 = vld [vmem:[#allocation7 + $0x128] sm:$0xff]
    %v732 = vld [vmem:[#allocation7 + $0x130] sm:$0xff]
    %v733 = vld [vmem:[#allocation7 + $0x138] sm:$0xff]
    %v734 = vld [vmem:[#allocation7 + $0x140] sm:$0xff]
    %v735 = vld [vmem:[#allocation7 + $0x148] sm:$0xff]
    %v736 = vld [vmem:[#allocation7 + $0x150] sm:$0xff]
    %v737 = vld [vmem:[#allocation7 + $0x158] sm:$0xff]
    %v738 = vld [vmem:[#allocation7 + $0x160] sm:$0xff]
    %v739 = vld [vmem:[#allocation7 + $0x168] sm:$0xff]
    %v740 = vld [vmem:[#allocation7 + $0x170] sm:$0xff]
    %v741 = vld [vmem:[#allocation7 + $0x178] sm:$0xff]
    %v742 = vld [vmem:[#allocation7 + $0x180] sm:$0xff]
    %v743 = vld [vmem:[#allocation7 + $0x188] sm:$0xff]
    %v744 = vld [vmem:[#allocation7 + $0x190] sm:$0xff]
    %v745 = vld [vmem:[#allocation7 + $0x198] sm:$0xff]
    %v746 = vld [vmem:[#allocation7 + $0x1a0] sm:$0xff]
    %v747 = vld [vmem:[#allocation7 + $0x1a8] sm:$0xff]
    %v748 = vld [vmem:[#allocation7 + $0x1b0] sm:$0xff]
    %v749 = vld [vmem:[#allocation7 + $0x1b8] sm:$0xff]
    %v750 = vld [vmem:[#allocation7 + $0x1c0] sm:$0xff]
    %v751 = vld [vmem:[#allocation7 + $0x1c8] sm:$0xff]
    %v752 = vld [vmem:[#allocation7 + $0x1d0] sm:$0xff]
    %v753 = vld [vmem:[#allocation7 + $0x1d8] sm:$0xff]
    %v754 = vld [vmem:[#allocation7 + $0x1e0] sm:$0xff]
    %v755 = vld [vmem:[#allocation7 + $0x1e8] sm:$0xff]
    %v756 = vld [vmem:[#allocation7 + $0x1f0] sm:$0xff]
    %v757 = vld [vmem:[#allocation7 + $0x1f8] sm:$0xff]
    %v758 = vld [vmem:[#allocation7 + $0x200] sm:$0xff]
    %v759 = vld [vmem:[#allocation7 + $0x208] sm:$0xff]
    %v760 = vld [vmem:[#allocation7 + $0x210] sm:$0xff]
    %v761 = vld [vmem:[#allocation7 + $0x218] sm:$0xff]
    %v762 = vld [vmem:[#allocation7 + $0x220] sm:$0xff]
    %v763 = vld [vmem:[#allocation7 + $0x228] sm:$0xff]
    %v764 = vld [vmem:[#allocation7 + $0x230] sm:$0xff]
    %v765 = vld [vmem:[#allocation7 + $0x238] sm:$0xff]
    %v766 = vld [vmem:[#allocation7 + $0x240] sm:$0xff]
    %v767 = vld [vmem:[#allocation7 + $0x248] sm:$0xff]
    %v768 = vld [vmem:[#allocation7 + $0x250] sm:$0xff]
    %v769 = vld [vmem:[#allocation7 + $0x258] sm:$0xff]
    %v770 = vld [vmem:[#allocation7 + $0x260] sm:$0xff]
    %v771 = vld [vmem:[#allocation7 + $0x268] sm:$0xff]
    %v772 = vld [vmem:[#allocation7 + $0x270] sm:$0xff]
    %v773 = vld [vmem:[#allocation7 + $0x278] sm:$0xff]
    %v774 = vld [vmem:[#allocation7 + $0x280] sm:$0xff]
    %v775 = vld [vmem:[#allocation7 + $0x288] sm:$0xff]
    %v776 = vld [vmem:[#allocation7 + $0x290] sm:$0xff]
    %v777 = vld [vmem:[#allocation7 + $0x298] sm:$0xff]
    %v778 = vld [vmem:[#allocation7 + $0x2a0] sm:$0xff]
    %v779 = vld [vmem:[#allocation7 + $0x2a8] sm:$0xff]
    %v780 = vld [vmem:[#allocation7 + $0x2b0] sm:$0xff]
    %v781 = vld [vmem:[#allocation7 + $0x2b8] sm:$0xff]
    %v782 = vld [vmem:[#allocation7 + $0x2c0] sm:$0xff]
    %v783 = vld [vmem:[#allocation7 + $0x2c8] sm:$0xff]
    %v784 = vld [vmem:[#allocation7 + $0x2d0] sm:$0xff]
    %v785 = vld [vmem:[#allocation7 + $0x2d8] sm:$0xff]
    %v786 = vld [vmem:[#allocation7 + $0x2e0] sm:$0xff]
    %v787 = vld [vmem:[#allocation7 + $0x2e8] sm:$0xff]
    %v788 = vld [vmem:[#allocation7 + $0x2f0] sm:$0xff]
    %v789 = vld [vmem:[#allocation7 + $0x2f8] sm:$0xff]
    %v790 = vld [vmem:[#allocation7 + $0x300] sm:$0xff]
    %v791 = vld [vmem:[#allocation7 + $0x308] sm:$0xff]
    %v792 = vld [vmem:[#allocation7 + $0x310] sm:$0xff]
    %v793 = vld [vmem:[#allocation7 + $0x318] sm:$0xff]
    %v794 = vld [vmem:[#allocation7 + $0x320] sm:$0xff]
    %v795 = vld [vmem:[#allocation7 + $0x328] sm:$0xff]
    %v796 = vld [vmem:[#allocation7 + $0x330] sm:$0xff]
    %v797 = vld [vmem:[#allocation7 + $0x338] sm:$0xff]
    %v798 = vld [vmem:[#allocation7 + $0x340] sm:$0xff]
    %v799 = vld [vmem:[#allocation7 + $0x348] sm:$0xff]
    %v800 = vld [vmem:[#allocation7 + $0x350] sm:$0xff]
    %v801 = vld [vmem:[#allocation7 + $0x358] sm:$0xff]
    %v802 = vld [vmem:[#allocation7 + $0x360] sm:$0xff]
    %v803 = vld [vmem:[#allocation7 + $0x368] sm:$0xff]
    %v804 = vld [vmem:[#allocation7 + $0x370] sm:$0xff]
    %v805 = vld [vmem:[#allocation7 + $0x378] sm:$0xff]
    %v806 = vld [vmem:[#allocation7 + $0x380] sm:$0xff]
    %v807 = vld [vmem:[#allocation7 + $0x388] sm:$0xff]
    %v808 = vld [vmem:[#allocation7 + $0x390] sm:$0xff]
    %v809 = vld [vmem:[#allocation7 + $0x398] sm:$0xff]
    %v810 = vld [vmem:[#allocation7 + $0x3a0] sm:$0xff]
    %v811 = vld [vmem:[#allocation7 + $0x3a8] sm:$0xff]
    %v812 = vld [vmem:[#allocation7 + $0x3b0] sm:$0xff]
    %v813 = vld [vmem:[#allocation7 + $0x3b8] sm:$0xff]
    %v814 = vld [vmem:[#allocation7 + $0x3c0] sm:$0xff]
    %v815 = vld [vmem:[#allocation7 + $0x3c8] sm:$0xff]
    %v816 = vld [vmem:[#allocation7 + $0x3d0] sm:$0xff]
    %v817 = vld [vmem:[#allocation7 + $0x3d8] sm:$0xff]
    %v818 = vld [vmem:[#allocation7 + $0x3e0] sm:$0xff]
    %v819 = vld [vmem:[#allocation7 + $0x3e8] sm:$0xff]
    %v820 = vld [vmem:[#allocation7 + $0x3f0] sm:$0xff]
    %v821 = vld [vmem:[#allocation7 + $0x3f8] sm:$0xff]
    %v822 = vld [vmem:[%s6] sm:$0xf]
    %v824 = vlaneseq
    %v825 = vshrl.u32 %v824, 7
    %v826 = vsub.s32 0, %v825
    %v827 = vrot.slane %v822, %v826
    %v828 = vlaneseq
    %v829 = vshrl.u32 %v828, 7
    %v830 = vsub.s32 1, %v829
    %v831 = vrot.slane %v822, %v830
    %v832 = vlaneseq
    %v833 = vshrl.u32 %v832, 7
    %v834 = vsub.s32 2, %v833
    %v835 = vrot.slane %v822, %v834
    %v836 = vlaneseq
    %v837 = vshrl.u32 %v836, 7
    %v838 = vsub.s32 3, %v837
    %v839 = vrot.slane %v822, %v838
    %v972 = vunpack.c.l.b16 %v694
    %v973 = vunpack.c.h.b16 %v694
    %v974 = vunpack.c.l.b16 %v695
    %v975 = vunpack.c.h.b16 %v695
    %v976 = vunpack.c.l.b16 %v696
    %v977 = vunpack.c.h.b16 %v696
    %v978 = vunpack.c.l.b16 %v697
    %v979 = vunpack.c.h.b16 %v697
    %v980 = vunpack.c.l.b16 %v698
    %v981 = vunpack.c.h.b16 %v698
    %v982 = vunpack.c.l.b16 %v699
    %v983 = vunpack.c.h.b16 %v699
    %v984 = vunpack.c.l.b16 %v700
    %v985 = vunpack.c.h.b16 %v700
    %v986 = vunpack.c.l.b16 %v701
    %v987 = vunpack.c.h.b16 %v701
    %v988 = vunpack.c.l.b16 %v702
    %v989 = vunpack.c.h.b16 %v702
    %v990 = vunpack.c.l.b16 %v703
    %v991 = vunpack.c.h.b16 %v703
    %v992 = vunpack.c.l.b16 %v704
    %v993 = vunpack.c.h.b16 %v704
    %v994 = vunpack.c.l.b16 %v705
    %v995 = vunpack.c.h.b16 %v705
    %v996 = vunpack.c.l.b16 %v706
    %v997 = vunpack.c.h.b16 %v706
    %v998 = vunpack.c.l.b16 %v707
    %v999 = vunpack.c.h.b16 %v707
    %v1000 = vunpack.c.l.b16 %v708
    %v1001 = vunpack.c.h.b16 %v708
    %v1002 = vunpack.c.l.b16 %v709
    %v1003 = vunpack.c.h.b16 %v709
    %v1004 = vunpack.c.l.b16 %v710
    %v1005 = vunpack.c.h.b16 %v710
    %v1006 = vunpack.c.l.b16 %v711
    %v1007 = vunpack.c.h.b16 %v711
    %v1008 = vunpack.c.l.b16 %v712
    %v1009 = vunpack.c.h.b16 %v712
    %v1010 = vunpack.c.l.b16 %v713
    %v1011 = vunpack.c.h.b16 %v713
    %v1012 = vunpack.c.l.b16 %v714
    %v1013 = vunpack.c.h.b16 %v714
    %v1014 = vunpack.c.l.b16 %v715
    %v1015 = vunpack.c.h.b16 %v715
    %v1016 = vunpack.c.l.b16 %v716
    %v1017 = vunpack.c.h.b16 %v716
    %v1018 = vunpack.c.l.b16 %v717
    %v1019 = vunpack.c.h.b16 %v717
    %v1020 = vunpack.c.l.b16 %v718
    %v1021 = vunpack.c.h.b16 %v718
    %v1022 = vunpack.c.l.b16 %v719
    %v1023 = vunpack.c.h.b16 %v719
    %v1024 = vunpack.c.l.b16 %v720
    %v1025 = vunpack.c.h.b16 %v720
    %v1026 = vunpack.c.l.b16 %v721
    %v1027 = vunpack.c.h.b16 %v721
    %v1028 = vunpack.c.l.b16 %v722
    %v1029 = vunpack.c.h.b16 %v722
    %v1030 = vunpack.c.l.b16 %v723
    %v1031 = vunpack.c.h.b16 %v723
    %v1032 = vunpack.c.l.b16 %v724
    %v1033 = vunpack.c.h.b16 %v724
    %v1034 = vunpack.c.l.b16 %v725
    %v1035 = vunpack.c.h.b16 %v725
    %v1036 = vunpack.c.l.b16 %v726
    %v1037 = vunpack.c.h.b16 %v726
    %v1038 = vunpack.c.l.b16 %v727
    %v1039 = vunpack.c.h.b16 %v727
    %v1040 = vunpack.c.l.b16 %v728
    %v1041 = vunpack.c.h.b16 %v728
    %v1042 = vunpack.c.l.b16 %v729
    %v1043 = vunpack.c.h.b16 %v729
    %v1044 = vunpack.c.l.b16 %v730
    %v1045 = vunpack.c.h.b16 %v730
    %v1046 = vunpack.c.l.b16 %v731
    %v1047 = vunpack.c.h.b16 %v731
    %v1048 = vunpack.c.l.b16 %v732
    %v1049 = vunpack.c.h.b16 %v732
    %v1050 = vunpack.c.l.b16 %v733
    %v1051 = vunpack.c.h.b16 %v733
    %v1052 = vunpack.c.l.b16 %v734
    %v1053 = vunpack.c.h.b16 %v734
    %v1054 = vunpack.c.l.b16 %v735
    %v1055 = vunpack.c.h.b16 %v735
    %v1056 = vunpack.c.l.b16 %v736
    %v1057 = vunpack.c.h.b16 %v736
    %v1058 = vunpack.c.l.b16 %v737
    %v1059 = vunpack.c.h.b16 %v737
    %v1060 = vunpack.c.l.b16 %v738
    %v1061 = vunpack.c.h.b16 %v738
    %v1062 = vunpack.c.l.b16 %v739
    %v1063 = vunpack.c.h.b16 %v739
    %v1064 = vunpack.c.l.b16 %v740
    %v1065 = vunpack.c.h.b16 %v740
    %v1066 = vunpack.c.l.b16 %v741
    %v1067 = vunpack.c.h.b16 %v741
    %v1068 = vunpack.c.l.b16 %v742
    %v1069 = vunpack.c.h.b16 %v742
    %v1070 = vunpack.c.l.b16 %v743
    %v1071 = vunpack.c.h.b16 %v743
    %v1072 = vunpack.c.l.b16 %v744
    %v1073 = vunpack.c.h.b16 %v744
    %v1074 = vunpack.c.l.b16 %v745
    %v1075 = vunpack.c.h.b16 %v745
    %v1076 = vunpack.c.l.b16 %v746
    %v1077 = vunpack.c.h.b16 %v746
    %v1078 = vunpack.c.l.b16 %v747
    %v1079 = vunpack.c.h.b16 %v747
    %v1080 = vunpack.c.l.b16 %v748
    %v1081 = vunpack.c.h.b16 %v748
    %v1082 = vunpack.c.l.b16 %v749
    %v1083 = vunpack.c.h.b16 %v749
    %v1084 = vunpack.c.l.b16 %v750
    %v1085 = vunpack.c.h.b16 %v750
    %v1086 = vunpack.c.l.b16 %v751
    %v1087 = vunpack.c.h.b16 %v751
    %v1088 = vunpack.c.l.b16 %v752
    %v1089 = vunpack.c.h.b16 %v752
    %v1090 = vunpack.c.l.b16 %v753
    %v1091 = vunpack.c.h.b16 %v753
    %v1092 = vunpack.c.l.b16 %v754
    %v1093 = vunpack.c.h.b16 %v754
    %v1094 = vunpack.c.l.b16 %v755
    %v1095 = vunpack.c.h.b16 %v755
    %v1096 = vunpack.c.l.b16 %v756
    %v1097 = vunpack.c.h.b16 %v756
    %v1098 = vunpack.c.l.b16 %v757
    %v1099 = vunpack.c.h.b16 %v757
    %v1100 = vunpack.c.l.b16 %v758
    %v1101 = vunpack.c.h.b16 %v758
    %v1102 = vunpack.c.l.b16 %v759
    %v1103 = vunpack.c.h.b16 %v759
    %v1104 = vunpack.c.l.b16 %v760
    %v1105 = vunpack.c.h.b16 %v760
    %v1106 = vunpack.c.l.b16 %v761
    %v1107 = vunpack.c.h.b16 %v761
    %v1108 = vunpack.c.l.b16 %v762
    %v1109 = vunpack.c.h.b16 %v762
    %v1110 = vunpack.c.l.b16 %v763
    %v1111 = vunpack.c.h.b16 %v763
    %v1112 = vunpack.c.l.b16 %v764
    %v1113 = vunpack.c.h.b16 %v764
    %v1114 = vunpack.c.l.b16 %v765
    %v1115 = vunpack.c.h.b16 %v765
    %v1116 = vunpack.c.l.b16 %v766
    %v1117 = vunpack.c.h.b16 %v766
    %v1118 = vunpack.c.l.b16 %v767
    %v1119 = vunpack.c.h.b16 %v767
    %v1120 = vunpack.c.l.b16 %v768
    %v1121 = vunpack.c.h.b16 %v768
    %v1122 = vunpack.c.l.b16 %v769
    %v1123 = vunpack.c.h.b16 %v769
    %v1124 = vunpack.c.l.b16 %v770
    %v1125 = vunpack.c.h.b16 %v770
    %v1126 = vunpack.c.l.b16 %v771
    %v1127 = vunpack.c.h.b16 %v771
    %v1128 = vunpack.c.l.b16 %v772
    %v1129 = vunpack.c.h.b16 %v772
    %v1130 = vunpack.c.l.b16 %v773
    %v1131 = vunpack.c.h.b16 %v773
    %v1132 = vunpack.c.l.b16 %v774
    %v1133 = vunpack.c.h.b16 %v774
    %v1134 = vunpack.c.l.b16 %v775
    %v1135 = vunpack.c.h.b16 %v775
    %v1136 = vunpack.c.l.b16 %v776
    %v1137 = vunpack.c.h.b16 %v776
    %v1138 = vunpack.c.l.b16 %v777
    %v1139 = vunpack.c.h.b16 %v777
    %v1140 = vunpack.c.l.b16 %v778
    %v1141 = vunpack.c.h.b16 %v778
    %v1142 = vunpack.c.l.b16 %v779
    %v1143 = vunpack.c.h.b16 %v779
    %v1144 = vunpack.c.l.b16 %v780
    %v1145 = vunpack.c.h.b16 %v780
    %v1146 = vunpack.c.l.b16 %v781
    %v1147 = vunpack.c.h.b16 %v781
    %v1148 = vunpack.c.l.b16 %v782
    %v1149 = vunpack.c.h.b16 %v782
    %v1150 = vunpack.c.l.b16 %v783
    %v1151 = vunpack.c.h.b16 %v783
    %v1152 = vunpack.c.l.b16 %v784
    %v1153 = vunpack.c.h.b16 %v784
    %v1154 = vunpack.c.l.b16 %v785
    %v1155 = vunpack.c.h.b16 %v785
    %v1156 = vunpack.c.l.b16 %v786
    %v1157 = vunpack.c.h.b16 %v786
    %v1158 = vunpack.c.l.b16 %v787
    %v1159 = vunpack.c.h.b16 %v787
    %v1160 = vunpack.c.l.b16 %v788
    %v1161 = vunpack.c.h.b16 %v788
    %v1162 = vunpack.c.l.b16 %v789
    %v1163 = vunpack.c.h.b16 %v789
    %v1164 = vunpack.c.l.b16 %v790
    %v1165 = vunpack.c.h.b16 %v790
    %v1166 = vunpack.c.l.b16 %v791
    %v1167 = vunpack.c.h.b16 %v791
    %v1168 = vunpack.c.l.b16 %v792
    %v1169 = vunpack.c.h.b16 %v792
    %v1170 = vunpack.c.l.b16 %v793
    %v1171 = vunpack.c.h.b16 %v793
    %v1172 = vunpack.c.l.b16 %v794
    %v1173 = vunpack.c.h.b16 %v794
    %v1174 = vunpack.c.l.b16 %v795
    %v1175 = vunpack.c.h.b16 %v795
    %v1176 = vunpack.c.l.b16 %v796
    %v1177 = vunpack.c.h.b16 %v796
    %v1178 = vunpack.c.l.b16 %v797
    %v1179 = vunpack.c.h.b16 %v797
    %v1180 = vunpack.c.l.b16 %v798
    %v1181 = vunpack.c.h.b16 %v798
    %v1182 = vunpack.c.l.b16 %v799
    %v1183 = vunpack.c.h.b16 %v799
    %v1184 = vunpack.c.l.b16 %v800
    %v1185 = vunpack.c.h.b16 %v800
    %v1186 = vunpack.c.l.b16 %v801
    %v1187 = vunpack.c.h.b16 %v801
    %v1188 = vunpack.c.l.b16 %v802
    %v1189 = vunpack.c.h.b16 %v802
    %v1190 = vunpack.c.l.b16 %v803
    %v1191 = vunpack.c.h.b16 %v803
    %v1192 = vunpack.c.l.b16 %v804
    %v1193 = vunpack.c.h.b16 %v804
    %v1194 = vunpack.c.l.b16 %v805
    %v1195 = vunpack.c.h.b16 %v805
    %v1196 = vunpack.c.l.b16 %v806
    %v1197 = vunpack.c.h.b16 %v806
    %v1198 = vunpack.c.l.b16 %v807
    %v1199 = vunpack.c.h.b16 %v807
    %v1200 = vunpack.c.l.b16 %v808
    %v1201 = vunpack.c.h.b16 %v808
    %v1202 = vunpack.c.l.b16 %v809
    %v1203 = vunpack.c.h.b16 %v809
    %v1204 = vunpack.c.l.b16 %v810
    %v1205 = vunpack.c.h.b16 %v810
    %v1206 = vunpack.c.l.b16 %v811
    %v1207 = vunpack.c.h.b16 %v811
    %v1208 = vunpack.c.l.b16 %v812
    %v1209 = vunpack.c.h.b16 %v812
    %v1210 = vunpack.c.l.b16 %v813
    %v1211 = vunpack.c.h.b16 %v813
    %v1212 = vunpack.c.l.b16 %v814
    %v1213 = vunpack.c.h.b16 %v814
    %v1214 = vunpack.c.l.b16 %v815
    %v1215 = vunpack.c.h.b16 %v815
    %v1216 = vunpack.c.l.b16 %v816
    %v1217 = vunpack.c.h.b16 %v816
    %v1218 = vunpack.c.l.b16 %v817
    %v1219 = vunpack.c.h.b16 %v817
    %v1220 = vunpack.c.l.b16 %v818
    %v1221 = vunpack.c.h.b16 %v818
    %v1222 = vunpack.c.l.b16 %v819
    %v1223 = vunpack.c.h.b16 %v819
    %v1224 = vunpack.c.l.b16 %v820
    %v1225 = vunpack.c.h.b16 %v820
    %v1226 = vunpack.c.l.b16 %v821
    %v1227 = vunpack.c.h.b16 %v821
    %v1228 = vpack.c.b16 %v976, %v972
    %v1229 = vpack.c.b16 %v977, %v973
    %v1230 = vpack.c.b16 %v978, %v974
    %v1231 = vpack.c.b16 %v979, %v975
    %v1232 = vpack.c.b16 %v984, %v980
    %v1233 = vpack.c.b16 %v985, %v981
    %v1234 = vpack.c.b16 %v986, %v982
    %v1235 = vpack.c.b16 %v987, %v983
    %v1236 = vpack.c.b16 %v992, %v988
    %v1237 = vpack.c.b16 %v993, %v989
    %v1238 = vpack.c.b16 %v994, %v990
    %v1239 = vpack.c.b16 %v995, %v991
    %v1240 = vpack.c.b16 %v1000, %v996
    %v1241 = vpack.c.b16 %v1001, %v997
    %v1242 = vpack.c.b16 %v1002, %v998
    %v1243 = vpack.c.b16 %v1003, %v999
    %v1244 = vpack.c.b16 %v1008, %v1004
    %v1245 = vpack.c.b16 %v1009, %v1005
    %v1246 = vpack.c.b16 %v1010, %v1006
    %v1247 = vpack.c.b16 %v1011, %v1007
    %v1248 = vpack.c.b16 %v1016, %v1012
    %v1249 = vpack.c.b16 %v1017, %v1013
    %v1250 = vpack.c.b16 %v1018, %v1014
    %v1251 = vpack.c.b16 %v1019, %v1015
    %v1252 = vpack.c.b16 %v1024, %v1020
    %v1253 = vpack.c.b16 %v1025, %v1021
    %v1254 = vpack.c.b16 %v1026, %v1022
    %v1255 = vpack.c.b16 %v1027, %v1023
    %v1256 = vpack.c.b16 %v1032, %v1028
    %v1257 = vpack.c.b16 %v1033, %v1029
    %v1258 = vpack.c.b16 %v1034, %v1030
    %v1259 = vpack.c.b16 %v1035, %v1031
    %v1260 = vpack.c.b16 %v1040, %v1036
    %v1261 = vpack.c.b16 %v1041, %v1037
    %v1262 = vpack.c.b16 %v1042, %v1038
    %v1263 = vpack.c.b16 %v1043, %v1039
    %v1264 = vpack.c.b16 %v1048, %v1044
    %v1265 = vpack.c.b16 %v1049, %v1045
    %v1266 = vpack.c.b16 %v1050, %v1046
    %v1267 = vpack.c.b16 %v1051, %v1047
    %v1268 = vpack.c.b16 %v1056, %v1052
    %v1269 = vpack.c.b16 %v1057, %v1053
    %v1270 = vpack.c.b16 %v1058, %v1054
    %v1271 = vpack.c.b16 %v1059, %v1055
    %v1272 = vpack.c.b16 %v1064, %v1060
    %v1273 = vpack.c.b16 %v1065, %v1061
    %v1274 = vpack.c.b16 %v1066, %v1062
    %v1275 = vpack.c.b16 %v1067, %v1063
    %v1276 = vpack.c.b16 %v1072, %v1068
    %v1277 = vpack.c.b16 %v1073, %v1069
    %v1278 = vpack.c.b16 %v1074, %v1070
    %v1279 = vpack.c.b16 %v1075, %v1071
    %v1280 = vpack.c.b16 %v1080, %v1076
    %v1281 = vpack.c.b16 %v1081, %v1077
    %v1282 = vpack.c.b16 %v1082, %v1078
    %v1283 = vpack.c.b16 %v1083, %v1079
    %v1284 = vpack.c.b16 %v1088, %v1084
    %v1285 = vpack.c.b16 %v1089, %v1085
    %v1286 = vpack.c.b16 %v1090, %v1086
    %v1287 = vpack.c.b16 %v1091, %v1087
    %v1288 = vpack.c.b16 %v1096, %v1092
    %v1289 = vpack.c.b16 %v1097, %v1093
    %v1290 = vpack.c.b16 %v1098, %v1094
    %v1291 = vpack.c.b16 %v1099, %v1095
    %v1292 = vpack.c.b16 %v1104, %v1100
    %v1293 = vpack.c.b16 %v1105, %v1101
    %v1294 = vpack.c.b16 %v1106, %v1102
    %v1295 = vpack.c.b16 %v1107, %v1103
    %v1296 = vpack.c.b16 %v1112, %v1108
    %v1297 = vpack.c.b16 %v1113, %v1109
    %v1298 = vpack.c.b16 %v1114, %v1110
    %v1299 = vpack.c.b16 %v1115, %v1111
    %v1300 = vpack.c.b16 %v1120, %v1116
    %v1301 = vpack.c.b16 %v1121, %v1117
    %v1302 = vpack.c.b16 %v1122, %v1118
    %v1303 = vpack.c.b16 %v1123, %v1119
    %v1304 = vpack.c.b16 %v1128, %v1124
    %v1305 = vpack.c.b16 %v1129, %v1125
    %v1306 = vpack.c.b16 %v1130, %v1126
    %v1307 = vpack.c.b16 %v1131, %v1127
    %v1308 = vpack.c.b16 %v1136, %v1132
    %v1309 = vpack.c.b16 %v1137, %v1133
    %v1310 = vpack.c.b16 %v1138, %v1134
    %v1311 = vpack.c.b16 %v1139, %v1135
    %v1312 = vpack.c.b16 %v1144, %v1140
    %v1313 = vpack.c.b16 %v1145, %v1141
    %v1314 = vpack.c.b16 %v1146, %v1142
    %v1315 = vpack.c.b16 %v1147, %v1143
    %v1316 = vpack.c.b16 %v1152, %v1148
    %v1317 = vpack.c.b16 %v1153, %v1149
    %v1318 = vpack.c.b16 %v1154, %v1150
    %v1319 = vpack.c.b16 %v1155, %v1151
    %v1320 = vpack.c.b16 %v1160, %v1156
    %v1321 = vpack.c.b16 %v1161, %v1157
    %v1322 = vpack.c.b16 %v1162, %v1158
    %v1323 = vpack.c.b16 %v1163, %v1159
    %v1324 = vpack.c.b16 %v1168, %v1164
    %v1325 = vpack.c.b16 %v1169, %v1165
    %v1326 = vpack.c.b16 %v1170, %v1166
    %v1327 = vpack.c.b16 %v1171, %v1167
    %v1328 = vpack.c.b16 %v1176, %v1172
    %v1329 = vpack.c.b16 %v1177, %v1173
    %v1330 = vpack.c.b16 %v1178, %v1174
    %v1331 = vpack.c.b16 %v1179, %v1175
    %v1332 = vpack.c.b16 %v1184, %v1180
    %v1333 = vpack.c.b16 %v1185, %v1181
    %v1334 = vpack.c.b16 %v1186, %v1182
    %v1335 = vpack.c.b16 %v1187, %v1183
    %v1336 = vpack.c.b16 %v1192, %v1188
    %v1337 = vpack.c.b16 %v1193, %v1189
    %v1338 = vpack.c.b16 %v1194, %v1190
    %v1339 = vpack.c.b16 %v1195, %v1191
    %v1340 = vpack.c.b16 %v1200, %v1196
    %v1341 = vpack.c.b16 %v1201, %v1197
    %v1342 = vpack.c.b16 %v1202, %v1198
    %v1343 = vpack.c.b16 %v1203, %v1199
    %v1344 = vpack.c.b16 %v1208, %v1204
    %v1345 = vpack.c.b16 %v1209, %v1205
    %v1346 = vpack.c.b16 %v1210, %v1206
    %v1347 = vpack.c.b16 %v1211, %v1207
    %v1348 = vpack.c.b16 %v1216, %v1212
    %v1349 = vpack.c.b16 %v1217, %v1213
    %v1350 = vpack.c.b16 %v1218, %v1214
    %v1351 = vpack.c.b16 %v1219, %v1215
    %v1352 = vpack.c.b16 %v1224, %v1220
    %v1353 = vpack.c.b16 %v1225, %v1221
    %v1354 = vpack.c.b16 %v1226, %v1222
    %v1355 = vpack.c.b16 %v1227, %v1223
    %1484 = vmatprep.subr.bf16.mxu0 %v1229
    %1485 = vmatpush1.bf16.msra.mxu0 %v1228
    %1486 = vmatprep.subr.bf16.mxu0 %v1233
    %1487 = vmatpush1.bf16.msra.mxu0 %v1232
    %1488 = vmatprep.subr.bf16.mxu0 %v1237
    %1489 = vmatpush1.bf16.msra.mxu0 %v1236
    %1490 = vmatprep.subr.bf16.mxu0 %v1241
    %1491 = vmatpush1.bf16.msra.mxu0 %v1240
    %1492 = vmatprep.subr.bf16.mxu0 %v1245
    %1493 = vmatpush1.bf16.msra.mxu0 %v1244
    %1494 = vmatprep.subr.bf16.mxu0 %v1249
    %1495 = vmatpush1.bf16.msra.mxu0 %v1248
    %1496 = vmatprep.subr.bf16.mxu0 %v1253
    %1497 = vmatpush1.bf16.msra.mxu0 %v1252
    %1498 = vmatprep.subr.bf16.mxu0 %v1257
    %1499 = vmatpush1.bf16.msra.mxu0 %v1256
    %1500 = vmatprep.subr.bf16.mxu0 %v1261
    %1501 = vmatpush1.bf16.msra.mxu0 %v1260
    %1502 = vmatprep.subr.bf16.mxu0 %v1265
    %1503 = vmatpush1.bf16.msra.mxu0 %v1264
    %1504 = vmatprep.subr.bf16.mxu0 %v1269
    %1505 = vmatpush1.bf16.msra.mxu0 %v1268
    %1506 = vmatprep.subr.bf16.mxu0 %v1273
    %1507 = vmatpush1.bf16.msra.mxu0 %v1272
    %1508 = vmatprep.subr.bf16.mxu0 %v1277
    %1509 = vmatpush1.bf16.msra.mxu0 %v1276
    %1510 = vmatprep.subr.bf16.mxu0 %v1281
    %1511 = vmatpush1.bf16.msra.mxu0 %v1280
    %1512 = vmatprep.subr.bf16.mxu0 %v1285
    %1513 = vmatpush1.bf16.msra.mxu0 %v1284
    %1514 = vmatprep.subr.bf16.mxu0 %v1289
    %1515 = vmatpush1.bf16.msra.mxu0 %v1288
    %1516 = vmatprep.mubr.bf16.mxu0 %v691
    %1517 = vmatmul.mubr.bf16.gmra.mrb[0].mxu0 %v690
    %v1518 = vpop.f32.mrb[0].mxu0
    %v1519 = vadd.f32 %v827, %v1518
    %v1520 = vpop.f32.mrb[0].mxu0
    %v1521 = vadd.f32 %v831, %v1520
    %v1522 = vpop.f32.mrb[0].mxu0
    %v1523 = vpop.f32.mrb[0].mxu0
    %1524 = vdwg.mxu0
    %1525 = vmatprep.subr.bf16.mxu0 %v1293
    %1526 = vmatpush1.bf16.msra.mxu0 %v1292
    %1527 = vmatprep.subr.bf16.mxu0 %v1297
    %1528 = vmatpush1.bf16.msra.mxu0 %v1296
    %1529 = vmatprep.subr.bf16.mxu0 %v1301
    %1530 = vmatpush1.bf16.msra.mxu0 %v1300
    %1531 = vmatprep.subr.bf16.mxu0 %v1305
    %1532 = vmatpush1.bf16.msra.mxu0 %v1304
    %1533 = vmatprep.subr.bf16.mxu0 %v1309
    %1534 = vmatpush1.bf16.msra.mxu0 %v1308
    %1535 = vmatprep.subr.bf16.mxu0 %v1313
    %1536 = vmatpush1.bf16.msra.mxu0 %v1312
    %1537 = vmatprep.subr.bf16.mxu0 %v1317
    %1538 = vmatpush1.bf16.msra.mxu0 %v1316
    %1539 = vmatprep.subr.bf16.mxu0 %v1321
    %1540 = vmatpush1.bf16.msra.mxu0 %v1320
    %1541 = vmatprep.subr.bf16.mxu0 %v1325
    %1542 = vmatpush1.bf16.msra.mxu0 %v1324
    %1543 = vmatprep.subr.bf16.mxu0 %v1329
    %1544 = vmatpush1.bf16.msra.mxu0 %v1328
    %1545 = vmatprep.subr.bf16.mxu0 %v1333
    %1546 = vmatpush1.bf16.msra.mxu0 %v1332
    %1547 = vmatprep.subr.bf16.mxu0 %v1337
    %1548 = vmatpush1.bf16.msra.mxu0 %v1336
    %1549 = vmatprep.subr.bf16.mxu0 %v1341
    %1550 = vmatpush1.bf16.msra.mxu0 %v1340
    %1551 = vmatprep.subr.bf16.mxu0 %v1345
    %1552 = vmatpush1.bf16.msra.mxu0 %v1344
    %1553 = vmatprep.subr.bf16.mxu0 %v1349
    %1554 = vmatpush1.bf16.msra.mxu0 %v1348
    %1555 = vmatprep.subr.bf16.mxu0 %v1353
    %1556 = vmatpush1.bf16.msra.mxu0 %v1352
    %1557 = vmatprep.mubr.bf16.mxu0 %v693
    %1558 = vmatmul.mubr.bf16.gmra.mrb[0].mxu0 %v692
    %v1559 = vpop.f32.mrb[0].mxu0
    %v1560 = vadd.f32 %v1519, %v1559
    %v1561 = vpop.f32.mrb[0].mxu0
    %v1562 = vadd.f32 %v1521, %v1561
    %v1563 = vpop.f32.mrb[0].mxu0
    %v1564 = vpop.f32.mrb[0].mxu0
    %1565 = vdwg.mxu0
    %1566 = vmatprep.subr.bf16.mxu0 %v1231
    %1567 = vmatpush1.bf16.msra.mxu0 %v1230
    %1568 = vmatprep.subr.bf16.mxu0 %v1235
    %1569 = vmatpush1.bf16.msra.mxu0 %v1234
    %1570 = vmatprep.subr.bf16.mxu0 %v1239
    %1571 = vmatpush1.bf16.msra.mxu0 %v1238
    %1572 = vmatprep.subr.bf16.mxu0 %v1243
    %1573 = vmatpush1.bf16.msra.mxu0 %v1242
    %1574 = vmatprep.subr.bf16.mxu0 %v1247
    %1575 = vmatpush1.bf16.msra.mxu0 %v1246
    %1576 = vmatprep.subr.bf16.mxu0 %v1251
    %1577 = vmatpush1.bf16.msra.mxu0 %v1250
    %1578 = vmatprep.subr.bf16.mxu0 %v1255
    %1579 = vmatpush1.bf16.msra.mxu0 %v1254
    %1580 = vmatprep.subr.bf16.mxu0 %v1259
    %1581 = vmatpush1.bf16.msra.mxu0 %v1258
    %1582 = vmatprep.subr.bf16.mxu0 %v1263
    %1583 = vmatpush1.bf16.msra.mxu0 %v1262
    %1584 = vmatprep.subr.bf16.mxu0 %v1267
    %1585 = vmatpush1.bf16.msra.mxu0 %v1266
    %1586 = vmatprep.subr.bf16.mxu0 %v1271
    %1587 = vmatpush1.bf16.msra.mxu0 %v1270
    %1588 = vmatprep.subr.bf16.mxu0 %v1275
    %1589 = vmatpush1.bf16.msra.mxu0 %v1274
    %1590 = vmatprep.subr.bf16.mxu0 %v1279
    %1591 = vmatpush1.bf16.msra.mxu0 %v1278
    %1592 = vmatprep.subr.bf16.mxu0 %v1283
    %1593 = vmatpush1.bf16.msra.mxu0 %v1282
    %1594 = vmatprep.subr.bf16.mxu0 %v1287
    %1595 = vmatpush1.bf16.msra.mxu0 %v1286
    %1596 = vmatprep.subr.bf16.mxu0 %v1291
    %1597 = vmatpush1.bf16.msra.mxu0 %v1290
    %1598 = vmatprep.mubr.bf16.mxu0 %v691
    %1599 = vmatmul.mubr.bf16.gmra.mrb[0].mxu0 %v690
    %v1600 = vpop.f32.mrb[0].mxu0
    %v1601 = vadd.f32 %v835, %v1600
    %v1602 = vpop.f32.mrb[0].mxu0
    %v1603 = vadd.f32 %v839, %v1602
    %v1604 = vpop.f32.mrb[0].mxu0
    %v1605 = vpop.f32.mrb[0].mxu0
    %1606 = vdwg.mxu0
    %1607 = vmatprep.subr.bf16.mxu0 %v1295
    %1608 = vmatpush1.bf16.msra.mxu0 %v1294
    %1609 = vmatprep.subr.bf16.mxu0 %v1299
    %1610 = vmatpush1.bf16.msra.mxu0 %v1298
    %1611 = vmatprep.subr.bf16.mxu0 %v1303
    %1612 = vmatpush1.bf16.msra.mxu0 %v1302
    %1613 = vmatprep.subr.bf16.mxu0 %v1307
    %1614 = vmatpush1.bf16.msra.mxu0 %v1306
    %1615 = vmatprep.subr.bf16.mxu0 %v1311
    %1616 = vmatpush1.bf16.msra.mxu0 %v1310
    %1617 = vmatprep.subr.bf16.mxu0 %v1315
    %1618 = vmatpush1.bf16.msra.mxu0 %v1314
    %1619 = vmatprep.subr.bf16.mxu0 %v1319
    %1620 = vmatpush1.bf16.msra.mxu0 %v1318
    %1621 = vmatprep.subr.bf16.mxu0 %v1323
    %1622 = vmatpush1.bf16.msra.mxu0 %v1322
    %1623 = vmatprep.subr.bf16.mxu0 %v1327
    %1624 = vmatpush1.bf16.msra.mxu0 %v1326
    %1625 = vmatprep.subr.bf16.mxu0 %v1331
    %1626 = vmatpush1.bf16.msra.mxu0 %v1330
    %1627 = vmatprep.subr.bf16.mxu0 %v1335
    %1628 = vmatpush1.bf16.msra.mxu0 %v1334
    %1629 = vmatprep.subr.bf16.mxu0 %v1339
    %1630 = vmatpush1.bf16.msra.mxu0 %v1338
    %1631 = vmatprep.subr.bf16.mxu0 %v1343
    %1632 = vmatpush1.bf16.msra.mxu0 %v1342
    %1633 = vmatprep.subr.bf16.mxu0 %v1347
    %1634 = vmatpush1.bf16.msra.mxu0 %v1346
    %1635 = vmatprep.subr.bf16.mxu0 %v1351
    %1636 = vmatpush1.bf16.msra.mxu0 %v1350
    %1637 = vmatprep.subr.bf16.mxu0 %v1355
    %1638 = vmatpush1.bf16.msra.mxu0 %v1354
    %1639 = vmatprep.mubr.bf16.mxu0 %v693
    %1640 = vmatmul.mubr.bf16.gmra.mrb[0].mxu0 %v692
    %v1641 = vpop.f32.mrb[0].mxu0
    %v1642 = vadd.f32 %v1601, %v1641
    %v1643 = vpop.f32.mrb[0].mxu0
    %v1644 = vadd.f32 %v1603, %v1643
    %v1645 = vpop.f32.mrb[0].mxu0
    %v1646 = vpop.f32.mrb[0].mxu0
    %1647 = vdwg.mxu0
    %v1648 = vmax.f32 %v1560, 0.0
    %v1649 = vmax.f32 %v1562, 0.0
    %v1650 = vmax.f32 %v1642, 0.0
    %v1651 = vmax.f32 %v1644, 0.0
    %v1652 = vld [vmem:[%s7] sm:$0xff]
    %v1653 = vld [vmem:[%s7 + $0x8] sm:$0xff]
    %v1654 = vpack.c.bf16 %v1648, %v1648
    %v1655 = vpack.c.bf16 %v1649, %v1649
    %v1656 = vpack.c.bf16 %v1650, %v1650
    %v1657 = vpack.c.bf16 %v1651, %v1651
    %v1658 = vld [vmem:[%s8] sm:$0xff]
    %1660 = vset.pattern.permute.xlu0 0
    %1661 = vperm.xlu0 %1660, %v1658
    %v1662 = vpop.permute.xlu0 %1661
    %v1666 = vunpack.c.l.b16 %v1652
    %v1667 = vunpack.c.h.b16 %v1652
    %v1668 = vunpack.c.l.b16 %v1653
    %v1669 = vunpack.c.h.b16 %v1653
    %v1670 = vpack.c.b16 %v1666, %v1666
    %v1671 = vpack.c.b16 %v1667, %v1667
    %v1672 = vpack.c.b16 %v1668, %v1668
    %v1673 = vpack.c.b16 %v1669, %v1669
    %1678 = vmatprep.subr.bf16.mxu0 %v1655
    %1679 = vmatpush1.bf16.xpose.msra.mxu0 %v1654
    %1680 = vmatprep.subr.bf16.mxu0 0
    %1681 = vmatpush1.bf16.xpose.msra.mxu0 0
    %1682 = vmatprep.subr.bf16.mxu0 0
    %1683 = vmatpush1.bf16.xpose.msra.mxu0 0
    %1684 = vmatprep.subr.bf16.mxu0 0
    %1685 = vmatpush1.bf16.xpose.msra.mxu0 0
    %1686 = vmatprep.subr.bf16.mxu0 0
    %1687 = vmatpush1.bf16.xpose.msra.mxu0 0
    %1688 = vmatprep.subr.bf16.mxu0 0
    %1689 = vmatpush1.bf16.xpose.msra.mxu0 0
    %1690 = vmatprep.subr.bf16.mxu0 0
    %1691 = vmatpush1.bf16.xpose.msra.mxu0 0
    %1692 = vmatprep.subr.bf16.mxu0 0
    %1693 = vmatpush1.bf16.xpose.msra.mxu0 0
    %1694 = vmatprep.subr.bf16.mxu0 0
    %1695 = vmatpush1.bf16.xpose.msra.mxu0 0
    %1696 = vmatprep.subr.bf16.mxu0 0
    %1697 = vmatpush1.bf16.xpose.msra.mxu0 0
    %1698 = vmatprep.subr.bf16.mxu0 0
    %1699 = vmatpush1.bf16.xpose.msra.mxu0 0
    %1700 = vmatprep.subr.bf16.mxu0 0
    %1701 = vmatpush1.bf16.xpose.msra.mxu0 0
    %1702 = vmatprep.subr.bf16.mxu0 0
    %1703 = vmatpush1.bf16.xpose.msra.mxu0 0
    %1704 = vmatprep.subr.bf16.mxu0 0
    %1705 = vmatpush1.bf16.xpose.msra.mxu0 0
    %1706 = vmatprep.subr.bf16.mxu0 0
    %1707 = vmatpush1.bf16.xpose.msra.mxu0 0
    %1708 = vmatprep.subr.bf16.mxu0 0
    %1709 = vmatpush1.bf16.xpose.msra.mxu0 0
    %1710 = vmatprep.mubr.bf16.mxu0 %v1671
    %1711 = vmatmul.mubr.bf16.gmra.mrb[0].mxu0 %v1670
    %v1712 = vpop.f32.mrb[0].mxu0
    %v1713 = vadd.f32 %v1662, %v1712
    %v1714 = vpop.f32.mrb[0].mxu0
    %v1715 = vpop.f32.mrb[0].mxu0
    %v1716 = vpop.f32.mrb[0].mxu0
    %1717 = vdwg.mxu0
    %1718 = vmatprep.subr.bf16.mxu0 %v1657
    %1719 = vmatpush1.bf16.xpose.msra.mxu0 %v1656
    %1720 = vmatprep.subr.bf16.mxu0 0
    %1721 = vmatpush1.bf16.xpose.msra.mxu0 0
    %1722 = vmatprep.subr.bf16.mxu0 0
    %1723 = vmatpush1.bf16.xpose.msra.mxu0 0
    %1724 = vmatprep.subr.bf16.mxu0 0
    %1725 = vmatpush1.bf16.xpose.msra.mxu0 0
    %1726 = vmatprep.subr.bf16.mxu0 0
    %1727 = vmatpush1.bf16.xpose.msra.mxu0 0
    %1728 = vmatprep.subr.bf16.mxu0 0
    %1729 = vmatpush1.bf16.xpose.msra.mxu0 0
    %1730 = vmatprep.subr.bf16.mxu0 0
    %1731 = vmatpush1.bf16.xpose.msra.mxu0 0
    %1732 = vmatprep.subr.bf16.mxu0 0
    %1733 = vmatpush1.bf16.xpose.msra.mxu0 0
    %1734 = vmatprep.subr.bf16.mxu0 0
    %1735 = vmatpush1.bf16.xpose.msra.mxu0 0
    %1736 = vmatprep.subr.bf16.mxu0 0
    %1737 = vmatpush1.bf16.xpose.msra.mxu0 0
    %1738 = vmatprep.subr.bf16.mxu0 0
    %1739 = vmatpush1.bf16.xpose.msra.mxu0 0
    %1740 = vmatprep.subr.bf16.mxu0 0
    %1741 = vmatpush1.bf16.xpose.msra.mxu0 0
    %1742 = vmatprep.subr.bf16.mxu0 0
    %1743 = vmatpush1.bf16.xpose.msra.mxu0 0
    %1744 = vmatprep.subr.bf16.mxu0 0
    %1745 = vmatpush1.bf16.xpose.msra.mxu0 0
    %1746 = vmatprep.subr.bf16.mxu0 0
    %1747 = vmatpush1.bf16.xpose.msra.mxu0 0
    %1748 = vmatprep.subr.bf16.mxu0 0
    %1749 = vmatpush1.bf16.xpose.msra.mxu0 0
    %1750 = vmatprep.mubr.bf16.mxu0 %v1673
    %1751 = vmatmul.mubr.bf16.gmra.mrb[0].mxu0 %v1672
    %v1752 = vpop.f32.mrb[0].mxu0
    %v1753 = vadd.f32 %v1713, %v1752
    %v1754 = vpop.f32.mrb[0].mxu0
    %v1755 = vpop.f32.mrb[0].mxu0
    %v1756 = vpop.f32.mrb[0].mxu0
    %1757 = vdwg.mxu0
    %vm1758 = vcmask 64512
    %1759 = vst.msk [vmem:[#allocation8] sm:$0xff] %vm1758, %v1753
    // Predicated region
    $region50: #{tpu_custom_call.1} parent=1 // pred_check
      _
    $region51: #{tpu_custom_call.1} parent=1 // pred_check_branch
      %1761 = sbr.rel (0) target = $region53
    $region52: #{tpu_custom_call.1} parent=1 // pred_region
      %s1763 = ssub.s32 128, 128
      %1764 = vsyncadd [#allocation4], %s1763
      %s1766 = sshll.u32 [#allocation8], 4
      %s1767 = int_to_ptr.vmem [resolvable:$true] %s1766
      %1769 = dma.vmem_to_hbm [thread:$0]  %s1767, 128, %s9, [#allocation4]
    $region53: #{tpu_custom_call.1} parent=1 // pred_fallthru
      _
    // Predicated region
    $region54: #{tpu_custom_call.1} parent=1 // pred_check
      _
    $region55: #{tpu_custom_call.1} parent=1 // pred_check_branch
      %1771 = sbr.rel (0) target = $region57
    $region56: #{tpu_custom_call.1} parent=1 // pred_region
      %1772 = dma.done [#allocation4], 128
    $region57: #{tpu_custom_call.1} parent=1 // pred_fallthru
      _
    %1773 = vsyncpa [#allocation3], 1
    %1774 = vsyncpa [#allocation6], 1
    %1775 = vsyncpa [#allocation4], 1

</llo_original>
